<compile_context>
chip_gen: v5e
topology: v5e:2x2
jax: 0.10.0
libtpu: 0.0.40
codegen_flags: <defaults>
</compile_context>

<pallas_src>
import math
import numpy as np
import jax
import jax.numpy as jnp
from jax.experimental import pallas as pl
from jax.experimental.pallas import tpu as pltpu


def _make_dense_block_kernel(nb_layers, in_planes, growth_rate, H, W):
    CF = in_planes + nb_layers * growth_rate      # final channel count
    HW = H * W
    PAD = W + 1                                   # zero run before/after interior
    PLEN = HW + 2 * PAD                           # row-padded flattened length

    def kernel(x_ref, scale_ref, bias_ref, w_ref, o_ref, ypad_ref, patch_ref):
        # x_ref:     (1, C0, HW)     input channels for this batch element
        # scale_ref: (L, CF, 1)      gamma/sqrt(var+eps), zero past Cin_l
        # bias_ref:  (L, CF, 1)      beta - mean*scale,   zero past Cin_l
        # w_ref:     (L, G, 9*CF)    conv taps (tap-major), zero past Cin_l
        # o_ref:     (1, CF, HW)     growing activation == final concat output
        # ypad_ref:  (CF, PLEN)      row-padded flattened BN+ReLU activations
        # patch_ref: (9*CF, HW)      im2col matrix
        C0 = x_ref.shape[1]

        # Seed the growing activation buffer: input channels + zeros for the
        # not-yet-produced channels (they are read with zero scale/bias/weights,
        # so only need to be finite).
        o_ref[0, :C0, :] = x_ref[0]
        o_ref[0, C0:, :] = jnp.zeros((CF - C0, HW), o_ref.dtype)

        # Zero only the conv zero-padding border strips (interior is fully
        # rewritten every layer).
        ypad_ref[:, :PAD] = jnp.zeros((CF, PAD), jnp.float32)
        ypad_ref[:, PAD + HW:] = jnp.zeros((CF, PLEN - PAD - HW), jnp.float32)

        # Lane masks for the left/right column borders (hoisted out of loops).
        xpos = jax.lax.broadcasted_iota(jnp.int32, (1, HW), 1) % W
        not_left = jnp.broadcast_to(xpos != 0, (CF, HW))        # dx == 0 taps
        not_right = jnp.broadcast_to(xpos != (W - 1), (CF, HW)) # dx == 2 taps

        for l in range(nb_layers):
            cin = in_planes + l * growth_rate

            # BN (folded, eval) + ReLU on all CF channel rows; rows >= cin have
            # scale=bias=0 (and zero weights), so they contribute nothing.
            y = jnp.maximum(o_ref[0] * scale_ref[l] + bias_ref[l], 0.0)
            ypad_ref[:, PAD:PAD + HW] = y

            # im2col: 9 shifted copies.  Row (y) padding is handled by the
            # zero border of ypad; column (x) padding by the lane masks.
            for t in range(9):
                dy, dx = divmod(t, 3)
                s = dy * W + dx
                p = ypad_ref[:, s:s + HW]
                if dx == 0:
                    p = jnp.where(not_left, p, 0.0)
                elif dx == 2:
                    p = jnp.where(not_right, p, 0.0)
                patch_ref[t * CF:(t + 1) * CF, :] = p

            # Single MXU matmul per layer: (G, 9*CF) x (9*CF, HW) -> (G, HW).
            out_l = jnp.dot(w_ref[l], patch_ref[...],
                            preferred_element_type=jnp.float32)

            # Append to the concat buffer (== torch.cat([x, out], dim=1)).
            o_ref[0, cin:cin + growth_rate, :] = out_l.astype(o_ref.dtype)

    return kernel, CF, HW, PLEN


def _pack_params(params, growth_rate, CF):
    """Pack per-layer BN/conv params into uniform, channel-padded tensors."""
    scales, biases, ws = [], [], []
    for p in params:
        cin = p["scale"].shape[0]
        scales.append(jnp.zeros((CF,), jnp.float32).at[:cin].set(p["scale"]))
        biases.append(jnp.zeros((CF,), jnp.float32).at[:cin].set(p["bias"]))
        # (G, cin, 3, 3) -> (G, 3, 3, cin) -> (G, 9, cin), tap index = dy*3+dx
        w = jnp.transpose(p["w_oihw"], (0, 2, 3, 1)).reshape(growth_rate, 9, cin)
        w = jnp.zeros((growth_rate, 9, CF), jnp.float32).at[:, :, :cin].set(w)
        ws.append(w.reshape(growth_rate, 9 * CF))
    return (jnp.stack(scales)[:, :, None],   # (L, CF, 1)
            jnp.stack(biases)[:, :, None],   # (L, CF, 1)
            jnp.stack(ws))                   # (L, G, 9*CF)


def dense_block_forward(x_nchw, params):
    """DenseBlock.forward (eval): one fused Pallas kernel, NCHW in/out."""
    N, C0, H, W = x_nchw.shape
    L = len(params)
    G = params[0]["w_oihw"].shape[0]
    CF = C0 + L * G
    HW = H * W

    scale_all, bias_all, w_all = _pack_params(params, G, CF)
    kernel, _, _, PLEN = _make_dense_block_kernel(L, C0, G, H, W)

    x_flat = x_nchw.reshape(N, C0, HW)       # NCHW flattened; no transpose
    out = pl.pallas_call(
        kernel,
        out_shape=jax.ShapeDtypeStruct((N, CF, HW), x_nchw.dtype),
        grid_spec=pltpu.PrefetchScalarGridSpec(
            num_scalar_prefetch=0,
            grid=(N,),
            in_specs=[
                pl.BlockSpec((1, C0, HW), lambda n: (n, 0, 0)),
                pl.BlockSpec((L, CF, 1), lambda n: (0, 0, 0)),
                pl.BlockSpec((L, CF, 1), lambda n: (0, 0, 0)),
                pl.BlockSpec((L, G, 9 * CF), lambda n: (0, 0, 0)),
            ],
            out_specs=pl.BlockSpec((1, CF, HW), lambda n: (n, 0, 0)),
            scratch_shapes=[
                pltpu.VMEM((CF, PLEN), jnp.float32),      # padded activations
                pltpu.VMEM((9 * CF, HW), jnp.float32),    # im2col matrix
            ],
        ),
        compiler_params=pltpu.CompilerParams(
            dimension_semantics=("parallel",)),
    )(x_flat, scale_all, bias_all, w_all)
    return out.reshape(N, CF, H, W)


def init_params(key, in_planes, growth_rate, nb_layers, eps=1e-5):
    """Deterministic synthetic parameters matching the PyTorch module shapes."""
    params = []
    for i in range(nb_layers):
        cin = in_planes + i * growth_rate
        key, k1, k2, k3, k4, k5 = jax.random.split(key, 6)
        gamma = 1.0 + 0.1 * jax.random.normal(k1, (cin,), jnp.float32)
        beta = 0.1 * jax.random.normal(k2, (cin,), jnp.float32)
        mean = 0.1 * jax.random.normal(k3, (cin,), jnp.float32)
        var = jax.random.uniform(k4, (cin,), jnp.float32, minval=0.5, maxval=1.5)
        # PyTorch conv weight layout: (Cout, Cin, kH, kW)
        w_oihw = jax.random.normal(k5, (growth_rate, cin, 3, 3), jnp.float32)
        w_oihw = w_oihw * (1.0 / math.sqrt(9.0 * cin))

        scale = gamma / jnp.sqrt(var + eps)
        bias = beta - mean * scale
        params.append(dict(scale=scale, bias=bias, w_oihw=w_oihw,
                           gamma=gamma, beta=beta, mean=mean, var=var))
    return params


def reference_forward(x_nchw, params, eps=1e-5):
    """Pure-JAX reference (lax.conv) mirroring the PyTorch forward (eval mode)."""
    x = x_nchw
    for p in params:
        m = p["mean"][None, :, None, None]
        v = p["var"][None, :, None, None]
        g = p["gamma"][None, :, None, None]
        b = p["beta"][None, :, None, None]
        y = jnp.maximum((x - m) / jnp.sqrt(v + eps) * g + b, 0.0)
        out = jax.lax.conv_general_dilated(
            y, p["w_oihw"], window_strides=(1, 1), padding=((1, 1), (1, 1)),
            dimension_numbers=("NCHW", "OIHW", "NCHW"))
        x = jnp.concatenate([x, out], axis=1)
    return x


if __name__ == "__main__":
    N, in_planes, H, W = 2, 4, 16, 16
    growth_rate, nb_layers = 4, 3

    key = jax.random.PRNGKey(0)
    kx, kp = jax.random.split(key)
    x = jax.random.normal(kx, (N, in_planes, H, W), jnp.float32)
    params = init_params(kp, in_planes, growth_rate, nb_layers)

    out = dense_block_forward(x, params)
    out = jax.block_until_ready(out)

    assert out.shape == (N, in_planes + nb_layers * growth_rate, H, W)

    ref = reference_forward(x, params)
    np.testing.assert_allclose(np.asarray(out), np.asarray(ref),
                               atol=1e-4, rtol=1e-4)
    print("KERNEL_OK")
</pallas_src>

<mosaic_0001>
module attributes {stable_mosaic.version = 11 : i64} {
  func.func @kernel(%arg0: i32, %arg1: memref<1x4x256xf32, #tpu.memory_space<vmem>>, %arg2: memref<3x16x1xf32, #tpu.memory_space<vmem>>, %arg3: memref<3x16x1xf32, #tpu.memory_space<vmem>>, %arg4: memref<3x4x144xf32, #tpu.memory_space<vmem>>, %arg5: memref<1x16x256xf32, #tpu.memory_space<vmem>>, %arg6: memref<16x290xf32, #tpu.memory_space<vmem>>, %arg7: memref<144x256xf32, #tpu.memory_space<vmem>>) attributes {dimension_semantics = [#tpu.dimension_semantics<parallel>], iteration_bounds = array<i64: 2>, scalar_prefetch = 0 : i64, scratch_operands = 2 : i64, tpu.core_type = #tpu.core_type<tc>, window_params = [{transform_indices = @transform_0, window_bounds = array<i64: 1, 4, 256>}, {pipeline_mode = #tpu.pipeline_mode<synchronous>, transform_indices = @transform_1, window_bounds = array<i64: 3, 16, 1>}, {pipeline_mode = #tpu.pipeline_mode<synchronous>, transform_indices = @transform_2, window_bounds = array<i64: 3, 16, 1>}, {pipeline_mode = #tpu.pipeline_mode<synchronous>, transform_indices = @transform_3, window_bounds = array<i64: 3, 4, 144>}, {transform_indices = @transform_4, window_bounds = array<i64: 1, 16, 256>}]} {
    %c0 = arith.constant 0 : index
    %c0_0 = arith.constant 0 : index
    %c0_1 = arith.constant 0 : index
    %0 = vector.load %arg1[%c0, %c0_0, %c0_1] : memref<1x4x256xf32, #tpu.memory_space<vmem>>, vector<1x4x256xf32>
    %1 = vector.shape_cast %0 : vector<1x4x256xf32> to vector<4x256xf32>
    %c0_2 = arith.constant 0 : index
    %c0_3 = arith.constant 0 : index
    %c0_4 = arith.constant 0 : index
    %2 = vector.load %arg5[%c0_2, %c0_3, %c0_4] : memref<1x16x256xf32, #tpu.memory_space<vmem>>, vector<1x4x256xf32>
    %3 = vector.shape_cast %2 : vector<1x4x256xf32> to vector<4x256xf32>
    %4 = vector.shape_cast %1 : vector<4x256xf32> to vector<1x4x256xf32>
    tpu.vector_store %arg5[%c0_2, %c0_3, %c0_4], %4 {strides = array<i32>} : memref<1x16x256xf32, #tpu.memory_space<vmem>>, vector<1x4x256xf32>,
    %cst = arith.constant 0.000000e+00 : f32
    %5 = vector.broadcast %cst : f32 to vector<12x256xf32>
    %c0_5 = arith.constant 0 : index
    %c4 = arith.constant 4 : index
    %c0_6 = arith.constant 0 : index
    %6 = vector.load %arg5[%c0_5, %c4, %c0_6] : memref<1x16x256xf32, #tpu.memory_space<vmem>>, vector<1x12x256xf32>
    %7 = vector.shape_cast %6 : vector<1x12x256xf32> to vector<12x256xf32>
    %8 = vector.shape_cast %5 : vector<12x256xf32> to vector<1x12x256xf32>
    tpu.vector_store %arg5[%c0_5, %c4, %c0_6], %8 {strides = array<i32>} : memref<1x16x256xf32, #tpu.memory_space<vmem>>, vector<1x12x256xf32>,
    %cst_7 = arith.constant 0.000000e+00 : f32
    %9 = vector.broadcast %cst_7 : f32 to vector<16x17xf32>
    %c0_8 = arith.constant 0 : index
    %c0_9 = arith.constant 0 : index
    %10 = vector.load %arg6[%c0_8, %c0_9] : memref<16x290xf32, #tpu.memory_space<vmem>>, vector<16x17xf32>
    tpu.vector_store %arg6[%c0_8, %c0_9], %9 {strides = array<i32>} : memref<16x290xf32, #tpu.memory_space<vmem>>, vector<16x17xf32>,
    %cst_10 = arith.constant 0.000000e+00 : f32
    %11 = vector.broadcast %cst_10 : f32 to vector<16x17xf32>
    %c0_11 = arith.constant 0 : index
    %c273 = arith.constant 273 : index
    %12 = vector.load %arg6[%c0_11, %c273] : memref<16x290xf32, #tpu.memory_space<vmem>>, vector<16x17xf32>
    tpu.vector_store %arg6[%c0_11, %c273], %11 {strides = array<i32>} : memref<16x290xf32, #tpu.memory_space<vmem>>, vector<16x17xf32>,
    %13 = tpu.iota {dimensions = array<i32: 1>} : vector<1x256xi32>
    %c16_i32 = arith.constant 16 : i32
    %c0_i32 = arith.constant 0 : i32
    %14 = arith.cmpi eq, %c16_i32, %c0_i32 : i32
    %c1_i32 = arith.constant 1 : i32
    %15 = arith.select %14, %c1_i32, %c16_i32 : i32
    %16 = vector.broadcast %15 : i32 to vector<1x256xi32>
    %17 = arith.remsi %13, %16 : vector<1x256xi32>
    %c0_i32_12 = arith.constant 0 : i32
    %18 = vector.broadcast %c0_i32_12 : i32 to vector<1x256xi32>
    %19 = arith.cmpi ne, %17, %18 : vector<1x256xi32>
    %c0_i32_13 = arith.constant 0 : i32
    %20 = vector.broadcast %c0_i32_13 : i32 to vector<1x256xi32>
    %21 = arith.cmpi slt, %17, %20 : vector<1x256xi32>
    %c0_i32_14 = arith.constant 0 : i32
    %22 = arith.cmpi slt, %15, %c0_i32_14 : i32
    %23 = vector.broadcast %22 : i1 to vector<1x256xi1>
    %24 = vector.broadcast %23 : vector<1x256xi1> to vector<1x256xi1>
    %25 = arith.xori %21, %24 : vector<1x256xi1>
    %26 = arith.andi %25, %19 : vector<1x256xi1>
    %27 = vector.broadcast %15 : i32 to vector<1x256xi32>
    %28 = arith.addi %17, %27 : vector<1x256xi32>
    %29 = arith.select %26, %28, %17 : vector<1x256xi1>, vector<1x256xi32>
    %c0_i32_15 = arith.constant 0 : i32
    %30 = vector.broadcast %c0_i32_15 : i32 to vector<1x256xi32>
    %31 = arith.cmpi ne, %29, %30 : vector<1x256xi32>
    %32 = vector.shape_cast %31 : vector<1x256xi1> to vector<1x256xi1>
    %33 = vector.broadcast %32 : vector<1x256xi1> to vector<16x256xi1>
    %c15_i32 = arith.constant 15 : i32
    %34 = vector.broadcast %c15_i32 : i32 to vector<1x256xi32>
    %35 = arith.cmpi ne, %29, %34 : vector<1x256xi32>
    %36 = vector.shape_cast %35 : vector<1x256xi1> to vector<1x256xi1>
    %37 = vector.broadcast %36 : vector<1x256xi1> to vector<16x256xi1>
    %c0_16 = arith.constant 0 : index
    %c0_17 = arith.constant 0 : index
    %c0_18 = arith.constant 0 : index
    %38 = vector.load %arg5[%c0_16, %c0_17, %c0_18] : memref<1x16x256xf32, #tpu.memory_space<vmem>>, vector<1x16x256xf32>
    %39 = vector.shape_cast %38 : vector<1x16x256xf32> to vector<16x256xf32>
    %c0_19 = arith.constant 0 : index
    %c0_20 = arith.constant 0 : index
    %c0_21 = arith.constant 0 : index
    %40 = vector.load %arg2[%c0_19, %c0_20, %c0_21] : memref<3x16x1xf32, #tpu.memory_space<vmem>>, vector<1x16x1xf32>
    %41 = vector.shape_cast %40 : vector<1x16x1xf32> to vector<16x1xf32>
    %42 = vector.broadcast %41 : vector<16x1xf32> to vector<16x256xf32>
    %43 = arith.mulf %39, %42 : vector<16x256xf32>
    %c0_22 = arith.constant 0 : index
    %c0_23 = arith.constant 0 : index
    %c0_24 = arith.constant 0 : index
    %44 = vector.load %arg3[%c0_22, %c0_23, %c0_24] : memref<3x16x1xf32, #tpu.memory_space<vmem>>, vector<1x16x1xf32>
    %45 = vector.shape_cast %44 : vector<1x16x1xf32> to vector<16x1xf32>
    %46 = vector.broadcast %45 : vector<16x1xf32> to vector<16x256xf32>
    %47 = arith.addf %43, %46 : vector<16x256xf32>
    %cst_25 = arith.constant 0.000000e+00 : f32
    %48 = vector.broadcast %cst_25 : f32 to vector<16x256xf32>
    %49 = arith.maximumf %47, %48 : vector<16x256xf32>
    %c0_26 = arith.constant 0 : index
    %c17 = arith.constant 17 : index
    %50 = vector.load %arg6[%c0_26, %c17] : memref<16x290xf32, #tpu.memory_space<vmem>>, vector<16x256xf32>
    tpu.vector_store %arg6[%c0_26, %c17], %49 {strides = array<i32>} : memref<16x290xf32, #tpu.memory_space<vmem>>, vector<16x256xf32>,
    %c0_27 = arith.constant 0 : index
    %c0_28 = arith.constant 0 : index
    %51 = vector.load %arg6[%c0_27, %c0_28] : memref<16x290xf32, #tpu.memory_space<vmem>>, vector<16x256xf32>
    %cst_29 = arith.constant 0.000000e+00 : f32
    %52 = vector.broadcast %cst_29 : f32 to vector<16x256xf32>
    %53 = arith.select %33, %51, %52 : vector<16x256xi1>, vector<16x256xf32>
    %c0_30 = arith.constant 0 : index
    %c0_31 = arith.constant 0 : index
    %54 = vector.load %arg7[%c0_30, %c0_31] : memref<144x256xf32, #tpu.memory_space<vmem>>, vector<16x256xf32>
    tpu.vector_store %arg7[%c0_30, %c0_31], %53 {strides = array<i32>} : memref<144x256xf32, #tpu.memory_space<vmem>>, vector<16x256xf32>,
    %c0_32 = arith.constant 0 : index
    %c1 = arith.constant 1 : index
    %55 = vector.load %arg6[%c0_32, %c1] : memref<16x290xf32, #tpu.memory_space<vmem>>, vector<16x256xf32>
    %c16 = arith.constant 16 : index
    %c0_33 = arith.constant 0 : index
    %56 = vector.load %arg7[%c16, %c0_33] : memref<144x256xf32, #tpu.memory_space<vmem>>, vector<16x256xf32>
    tpu.vector_store %arg7[%c16, %c0_33], %55 {strides = array<i32>} : memref<144x256xf32, #tpu.memory_space<vmem>>, vector<16x256xf32>,
    %c0_34 = arith.constant 0 : index
    %c2 = arith.constant 2 : index
    %57 = vector.load %arg6[%c0_34, %c2] : memref<16x290xf32, #tpu.memory_space<vmem>>, vector<16x256xf32>
    %cst_35 = arith.constant 0.000000e+00 : f32
    %58 = vector.broadcast %cst_35 : f32 to vector<16x256xf32>
    %59 = arith.select %37, %57, %58 : vector<16x256xi1>, vector<16x256xf32>
    %c32 = arith.constant 32 : index
    %c0_36 = arith.constant 0 : index
    %60 = vector.load %arg7[%c32, %c0_36] : memref<144x256xf32, #tpu.memory_space<vmem>>, vector<16x256xf32>
    tpu.vector_store %arg7[%c32, %c0_36], %59 {strides = array<i32>} : memref<144x256xf32, #tpu.memory_space<vmem>>, vector<16x256xf32>,
    %c0_37 = arith.constant 0 : index
    %c16_38 = arith.constant 16 : index
    %61 = vector.load %arg6[%c0_37, %c16_38] : memref<16x290xf32, #tpu.memory_space<vmem>>, vector<16x256xf32>
    %cst_39 = arith.constant 0.000000e+00 : f32
    %62 = vector.broadcast %cst_39 : f32 to vector<16x256xf32>
    %63 = arith.select %33, %61, %62 : vector<16x256xi1>, vector<16x256xf32>
    %c48 = arith.constant 48 : index
    %c0_40 = arith.constant 0 : index
    %64 = vector.load %arg7[%c48, %c0_40] : memref<144x256xf32, #tpu.memory_space<vmem>>, vector<16x256xf32>
    tpu.vector_store %arg7[%c48, %c0_40], %63 {strides = array<i32>} : memref<144x256xf32, #tpu.memory_space<vmem>>, vector<16x256xf32>,
    %c0_41 = arith.constant 0 : index
    %c17_42 = arith.constant 17 : index
    %65 = vector.load %arg6[%c0_41, %c17_42] : memref<16x290xf32, #tpu.memory_space<vmem>>, vector<16x256xf32>
    %c64 = arith.constant 64 : index
    %c0_43 = arith.constant 0 : index
    %66 = vector.load %arg7[%c64, %c0_43] : memref<144x256xf32, #tpu.memory_space<vmem>>, vector<16x256xf32>
    tpu.vector_store %arg7[%c64, %c0_43], %65 {strides = array<i32>} : memref<144x256xf32, #tpu.memory_space<vmem>>, vector<16x256xf32>,
    %c0_44 = arith.constant 0 : index
    %c18 = arith.constant 18 : index
    %67 = vector.load %arg6[%c0_44, %c18] : memref<16x290xf32, #tpu.memory_space<vmem>>, vector<16x256xf32>
    %cst_45 = arith.constant 0.000000e+00 : f32
    %68 = vector.broadcast %cst_45 : f32 to vector<16x256xf32>
    %69 = arith.select %37, %67, %68 : vector<16x256xi1>, vector<16x256xf32>
    %c80 = arith.constant 80 : index
    %c0_46 = arith.constant 0 : index
    %70 = vector.load %arg7[%c80, %c0_46] : memref<144x256xf32, #tpu.memory_space<vmem>>, vector<16x256xf32>
    tpu.vector_store %arg7[%c80, %c0_46], %69 {strides = array<i32>} : memref<144x256xf32, #tpu.memory_space<vmem>>, vector<16x256xf32>,
    %c0_47 = arith.constant 0 : index
    %c32_48 = arith.constant 32 : index
    %71 = vector.load %arg6[%c0_47, %c32_48] : memref<16x290xf32, #tpu.memory_space<vmem>>, vector<16x256xf32>
    %cst_49 = arith.constant 0.000000e+00 : f32
    %72 = vector.broadcast %cst_49 : f32 to vector<16x256xf32>
    %73 = arith.select %33, %71, %72 : vector<16x256xi1>, vector<16x256xf32>
    %c96 = arith.constant 96 : index
    %c0_50 = arith.constant 0 : index
    %74 = vector.load %arg7[%c96, %c0_50] : memref<144x256xf32, #tpu.memory_space<vmem>>, vector<16x256xf32>
    tpu.vector_store %arg7[%c96, %c0_50], %73 {strides = array<i32>} : memref<144x256xf32, #tpu.memory_space<vmem>>, vector<16x256xf32>,
    %c0_51 = arith.constant 0 : index
    %c33 = arith.constant 33 : index
    %75 = vector.load %arg6[%c0_51, %c33] : memref<16x290xf32, #tpu.memory_space<vmem>>, vector<16x256xf32>
    %c112 = arith.constant 112 : index
    %c0_52 = arith.constant 0 : index
    %76 = vector.load %arg7[%c112, %c0_52] : memref<144x256xf32, #tpu.memory_space<vmem>>, vector<16x256xf32>
    tpu.vector_store %arg7[%c112, %c0_52], %75 {strides = array<i32>} : memref<144x256xf32, #tpu.memory_space<vmem>>, vector<16x256xf32>,
    %c0_53 = arith.constant 0 : index
    %c34 = arith.constant 34 : index
    %77 = vector.load %arg6[%c0_53, %c34] : memref<16x290xf32, #tpu.memory_space<vmem>>, vector<16x256xf32>
    %cst_54 = arith.constant 0.000000e+00 : f32
    %78 = vector.broadcast %cst_54 : f32 to vector<16x256xf32>
    %79 = arith.select %37, %77, %78 : vector<16x256xi1>, vector<16x256xf32>
    %c128 = arith.constant 128 : index
    %c0_55 = arith.constant 0 : index
    %80 = vector.load %arg7[%c128, %c0_55] : memref<144x256xf32, #tpu.memory_space<vmem>>, vector<16x256xf32>
    tpu.vector_store %arg7[%c128, %c0_55], %79 {strides = array<i32>} : memref<144x256xf32, #tpu.memory_space<vmem>>, vector<16x256xf32>,
    %c0_56 = arith.constant 0 : index
    %c0_57 = arith.constant 0 : index
    %c0_58 = arith.constant 0 : index
    %81 = vector.load %arg4[%c0_56, %c0_57, %c0_58] : memref<3x4x144xf32, #tpu.memory_space<vmem>>, vector<1x4x144xf32>
    %82 = vector.shape_cast %81 : vector<1x4x144xf32> to vector<4x144xf32>
    %c0_59 = arith.constant 0 : index
    %c0_60 = arith.constant 0 : index
    %83 = vector.load %arg7[%c0_59, %c0_60] : memref<144x256xf32, #tpu.memory_space<vmem>>, vector<144x256xf32>
    %cst_61 = arith.constant dense<0.000000e+00> : vector<4x256xf32>
    %84 = tpu.matmul %82, %83, %cst_61 {dimension_numbers = #tpu.dot_dimension_numbers<[1], [0], [0], [1], [0, 0, 1, 1], [], []>} : vector<4x144xf32>, vector<144x256xf32>, vector<4x256xf32> -> vector<4x256xf32>
    %c0_62 = arith.constant 0 : index
    %c4_63 = arith.constant 4 : index
    %c0_64 = arith.constant 0 : index
    %85 = vector.load %arg5[%c0_62, %c4_63, %c0_64] : memref<1x16x256xf32, #tpu.memory_space<vmem>>, vector<1x4x256xf32>
    %86 = vector.shape_cast %85 : vector<1x4x256xf32> to vector<4x256xf32>
    %87 = vector.shape_cast %84 : vector<4x256xf32> to vector<1x4x256xf32>
    tpu.vector_store %arg5[%c0_62, %c4_63, %c0_64], %87 {strides = array<i32>} : memref<1x16x256xf32, #tpu.memory_space<vmem>>, vector<1x4x256xf32>,
    %c0_65 = arith.constant 0 : index
    %c0_66 = arith.constant 0 : index
    %c0_67 = arith.constant 0 : index
    %88 = vector.load %arg5[%c0_65, %c0_66, %c0_67] : memref<1x16x256xf32, #tpu.memory_space<vmem>>, vector<1x16x256xf32>
    %89 = vector.shape_cast %88 : vector<1x16x256xf32> to vector<16x256xf32>
    %c1_68 = arith.constant 1 : index
    %c0_69 = arith.constant 0 : index
    %c0_70 = arith.constant 0 : index
    %90 = vector.load %arg2[%c1_68, %c0_69, %c0_70] : memref<3x16x1xf32, #tpu.memory_space<vmem>>, vector<1x16x1xf32>
    %91 = vector.shape_cast %90 : vector<1x16x1xf32> to vector<16x1xf32>
    %92 = vector.broadcast %91 : vector<16x1xf32> to vector<16x256xf32>
    %93 = arith.mulf %89, %92 : vector<16x256xf32>
    %c1_71 = arith.constant 1 : index
    %c0_72 = arith.constant 0 : index
    %c0_73 = arith.constant 0 : index
    %94 = vector.load %arg3[%c1_71, %c0_72, %c0_73] : memref<3x16x1xf32, #tpu.memory_space<vmem>>, vector<1x16x1xf32>
    %95 = vector.shape_cast %94 : vector<1x16x1xf32> to vector<16x1xf32>
    %96 = vector.broadcast %95 : vector<16x1xf32> to vector<16x256xf32>
    %97 = arith.addf %93, %96 : vector<16x256xf32>
    %cst_74 = arith.constant 0.000000e+00 : f32
    %98 = vector.broadcast %cst_74 : f32 to vector<16x256xf32>
    %99 = arith.maximumf %97, %98 : vector<16x256xf32>
    %c0_75 = arith.constant 0 : index
    %c17_76 = arith.constant 17 : index
    %100 = vector.load %arg6[%c0_75, %c17_76] : memref<16x290xf32, #tpu.memory_space<vmem>>, vector<16x256xf32>
    tpu.vector_store %arg6[%c0_75, %c17_76], %99 {strides = array<i32>} : memref<16x290xf32, #tpu.memory_space<vmem>>, vector<16x256xf32>,
    %c0_77 = arith.constant 0 : index
    %c0_78 = arith.constant 0 : index
    %101 = vector.load %arg6[%c0_77, %c0_78] : memref<16x290xf32, #tpu.memory_space<vmem>>, vector<16x256xf32>
    %cst_79 = arith.constant 0.000000e+00 : f32
    %102 = vector.broadcast %cst_79 : f32 to vector<16x256xf32>
    %103 = arith.select %33, %101, %102 : vector<16x256xi1>, vector<16x256xf32>
    %c0_80 = arith.constant 0 : index
    %c0_81 = arith.constant 0 : index
    %104 = vector.load %arg7[%c0_80, %c0_81] : memref<144x256xf32, #tpu.memory_space<vmem>>, vector<16x256xf32>
    tpu.vector_store %arg7[%c0_80, %c0_81], %103 {strides = array<i32>} : memref<144x256xf32, #tpu.memory_space<vmem>>, vector<16x256xf32>,
    %c0_82 = arith.constant 0 : index
    %c1_83 = arith.constant 1 : index
    %105 = vector.load %arg6[%c0_82, %c1_83] : memref<16x290xf32, #tpu.memory_space<vmem>>, vector<16x256xf32>
    %c16_84 = arith.constant 16 : index
    %c0_85 = arith.constant 0 : index
    %106 = vector.load %arg7[%c16_84, %c0_85] : memref<144x256xf32, #tpu.memory_space<vmem>>, vector<16x256xf32>
    tpu.vector_store %arg7[%c16_84, %c0_85], %105 {strides = array<i32>} : memref<144x256xf32, #tpu.memory_space<vmem>>, vector<16x256xf32>,
    %c0_86 = arith.constant 0 : index
    %c2_87 = arith.constant 2 : index
    %107 = vector.load %arg6[%c0_86, %c2_87] : memref<16x290xf32, #tpu.memory_space<vmem>>, vector<16x256xf32>
    %cst_88 = arith.constant 0.000000e+00 : f32
    %108 = vector.broadcast %cst_88 : f32 to vector<16x256xf32>
    %109 = arith.select %37, %107, %108 : vector<16x256xi1>, vector<16x256xf32>
    %c32_89 = arith.constant 32 : index
    %c0_90 = arith.constant 0 : index
    %110 = vector.load %arg7[%c32_89, %c0_90] : memref<144x256xf32, #tpu.memory_space<vmem>>, vector<16x256xf32>
    tpu.vector_store %arg7[%c32_89, %c0_90], %109 {strides = array<i32>} : memref<144x256xf32, #tpu.memory_space<vmem>>, vector<16x256xf32>,
    %c0_91 = arith.constant 0 : index
    %c16_92 = arith.constant 16 : index
    %111 = vector.load %arg6[%c0_91, %c16_92] : memref<16x290xf32, #tpu.memory_space<vmem>>, vector<16x256xf32>
    %cst_93 = arith.constant 0.000000e+00 : f32
    %112 = vector.broadcast %cst_93 : f32 to vector<16x256xf32>
    %113 = arith.select %33, %111, %112 : vector<16x256xi1>, vector<16x256xf32>
    %c48_94 = arith.constant 48 : index
    %c0_95 = arith.constant 0 : index
    %114 = vector.load %arg7[%c48_94, %c0_95] : memref<144x256xf32, #tpu.memory_space<vmem>>, vector<16x256xf32>
    tpu.vector_store %arg7[%c48_94, %c0_95], %113 {strides = array<i32>} : memref<144x256xf32, #tpu.memory_space<vmem>>, vector<16x256xf32>,
    %c0_96 = arith.constant 0 : index
    %c17_97 = arith.constant 17 : index
    %115 = vector.load %arg6[%c0_96, %c17_97] : memref<16x290xf32, #tpu.memory_space<vmem>>, vector<16x256xf32>
    %c64_98 = arith.constant 64 : index
    %c0_99 = arith.constant 0 : index
    %116 = vector.load %arg7[%c64_98, %c0_99] : memref<144x256xf32, #tpu.memory_space<vmem>>, vector<16x256xf32>
    tpu.vector_store %arg7[%c64_98, %c0_99], %115 {strides = array<i32>} : memref<144x256xf32, #tpu.memory_space<vmem>>, vector<16x256xf32>,
    %c0_100 = arith.constant 0 : index
    %c18_101 = arith.constant 18 : index
    %117 = vector.load %arg6[%c0_100, %c18_101] : memref<16x290xf32, #tpu.memory_space<vmem>>, vector<16x256xf32>
    %cst_102 = arith.constant 0.000000e+00 : f32
    %118 = vector.broadcast %cst_102 : f32 to vector<16x256xf32>
    %119 = arith.select %37, %117, %118 : vector<16x256xi1>, vector<16x256xf32>
    %c80_103 = arith.constant 80 : index
    %c0_104 = arith.constant 0 : index
    %120 = vector.load %arg7[%c80_103, %c0_104] : memref<144x256xf32, #tpu.memory_space<vmem>>, vector<16x256xf32>
    tpu.vector_store %arg7[%c80_103, %c0_104], %119 {strides = array<i32>} : memref<144x256xf32, #tpu.memory_space<vmem>>, vector<16x256xf32>,
    %c0_105 = arith.constant 0 : index
    %c32_106 = arith.constant 32 : index
    %121 = vector.load %arg6[%c0_105, %c32_106] : memref<16x290xf32, #tpu.memory_space<vmem>>, vector<16x256xf32>
    %cst_107 = arith.constant 0.000000e+00 : f32
    %122 = vector.broadcast %cst_107 : f32 to vector<16x256xf32>
    %123 = arith.select %33, %121, %122 : vector<16x256xi1>, vector<16x256xf32>
    %c96_108 = arith.constant 96 : index
    %c0_109 = arith.constant 0 : index
    %124 = vector.load %arg7[%c96_108, %c0_109] : memref<144x256xf32, #tpu.memory_space<vmem>>, vector<16x256xf32>
    tpu.vector_store %arg7[%c96_108, %c0_109], %123 {strides = array<i32>} : memref<144x256xf32, #tpu.memory_space<vmem>>, vector<16x256xf32>,
    %c0_110 = arith.constant 0 : index
    %c33_111 = arith.constant 33 : index
    %125 = vector.load %arg6[%c0_110, %c33_111] : memref<16x290xf32, #tpu.memory_space<vmem>>, vector<16x256xf32>
    %c112_112 = arith.constant 112 : index
    %c0_113 = arith.constant 0 : index
    %126 = vector.load %arg7[%c112_112, %c0_113] : memref<144x256xf32, #tpu.memory_space<vmem>>, vector<16x256xf32>
    tpu.vector_store %arg7[%c112_112, %c0_113], %125 {strides = array<i32>} : memref<144x256xf32, #tpu.memory_space<vmem>>, vector<16x256xf32>,
    %c0_114 = arith.constant 0 : index
    %c34_115 = arith.constant 34 : index
    %127 = vector.load %arg6[%c0_114, %c34_115] : memref<16x290xf32, #tpu.memory_space<vmem>>, vector<16x256xf32>
    %cst_116 = arith.constant 0.000000e+00 : f32
    %128 = vector.broadcast %cst_116 : f32 to vector<16x256xf32>
    %129 = arith.select %37, %127, %128 : vector<16x256xi1>, vector<16x256xf32>
    %c128_117 = arith.constant 128 : index
    %c0_118 = arith.constant 0 : index
    %130 = vector.load %arg7[%c128_117, %c0_118] : memref<144x256xf32, #tpu.memory_space<vmem>>, vector<16x256xf32>
    tpu.vector_store %arg7[%c128_117, %c0_118], %129 {strides = array<i32>} : memref<144x256xf32, #tpu.memory_space<vmem>>, vector<16x256xf32>,
    %c1_119 = arith.constant 1 : index
    %c0_120 = arith.constant 0 : index
    %c0_121 = arith.constant 0 : index
    %131 = vector.load %arg4[%c1_119, %c0_120, %c0_121] : memref<3x4x144xf32, #tpu.memory_space<vmem>>, vector<1x4x144xf32>
    %132 = vector.shape_cast %131 : vector<1x4x144xf32> to vector<4x144xf32>
    %c0_122 = arith.constant 0 : index
    %c0_123 = arith.constant 0 : index
    %133 = vector.load %arg7[%c0_122, %c0_123] : memref<144x256xf32, #tpu.memory_space<vmem>>, vector<144x256xf32>
    %cst_124 = arith.constant dense<0.000000e+00> : vector<4x256xf32>
    %134 = tpu.matmul %132, %133, %cst_124 {dimension_numbers = #tpu.dot_dimension_numbers<[1], [0], [0], [1], [0, 0, 1, 1], [], []>} : vector<4x144xf32>, vector<144x256xf32>, vector<4x256xf32> -> vector<4x256xf32>
    %c0_125 = arith.constant 0 : index
    %c8 = arith.constant 8 : index
    %c0_126 = arith.constant 0 : index
    %135 = vector.load %arg5[%c0_125, %c8, %c0_126] : memref<1x16x256xf32, #tpu.memory_space<vmem>>, vector<1x4x256xf32>
    %136 = vector.shape_cast %135 : vector<1x4x256xf32> to vector<4x256xf32>
    %137 = vector.shape_cast %134 : vector<4x256xf32> to vector<1x4x256xf32>
    tpu.vector_store %arg5[%c0_125, %c8, %c0_126], %137 {strides = array<i32>} : memref<1x16x256xf32, #tpu.memory_space<vmem>>, vector<1x4x256xf32>,
    %c0_127 = arith.constant 0 : index
    %c0_128 = arith.constant 0 : index
    %c0_129 = arith.constant 0 : index
    %138 = vector.load %arg5[%c0_127, %c0_128, %c0_129] : memref<1x16x256xf32, #tpu.memory_space<vmem>>, vector<1x16x256xf32>
    %139 = vector.shape_cast %138 : vector<1x16x256xf32> to vector<16x256xf32>
    %c2_130 = arith.constant 2 : index
    %c0_131 = arith.constant 0 : index
    %c0_132 = arith.constant 0 : index
    %140 = vector.load %arg2[%c2_130, %c0_131, %c0_132] : memref<3x16x1xf32, #tpu.memory_space<vmem>>, vector<1x16x1xf32>
    %141 = vector.shape_cast %140 : vector<1x16x1xf32> to vector<16x1xf32>
    %142 = vector.broadcast %141 : vector<16x1xf32> to vector<16x256xf32>
    %143 = arith.mulf %139, %142 : vector<16x256xf32>
    %c2_133 = arith.constant 2 : index
    %c0_134 = arith.constant 0 : index
    %c0_135 = arith.constant 0 : index
    %144 = vector.load %arg3[%c2_133, %c0_134, %c0_135] : memref<3x16x1xf32, #tpu.memory_space<vmem>>, vector<1x16x1xf32>
    %145 = vector.shape_cast %144 : vector<1x16x1xf32> to vector<16x1xf32>
    %146 = vector.broadcast %145 : vector<16x1xf32> to vector<16x256xf32>
    %147 = arith.addf %143, %146 : vector<16x256xf32>
    %cst_136 = arith.constant 0.000000e+00 : f32
    %148 = vector.broadcast %cst_136 : f32 to vector<16x256xf32>
    %149 = arith.maximumf %147, %148 : vector<16x256xf32>
    %c0_137 = arith.constant 0 : index
    %c17_138 = arith.constant 17 : index
    %150 = vector.load %arg6[%c0_137, %c17_138] : memref<16x290xf32, #tpu.memory_space<vmem>>, vector<16x256xf32>
    tpu.vector_store %arg6[%c0_137, %c17_138], %149 {strides = array<i32>} : memref<16x290xf32, #tpu.memory_space<vmem>>, vector<16x256xf32>,
    %c0_139 = arith.constant 0 : index
    %c0_140 = arith.constant 0 : index
    %151 = vector.load %arg6[%c0_139, %c0_140] : memref<16x290xf32, #tpu.memory_space<vmem>>, vector<16x256xf32>
    %cst_141 = arith.constant 0.000000e+00 : f32
    %152 = vector.broadcast %cst_141 : f32 to vector<16x256xf32>
    %153 = arith.select %33, %151, %152 : vector<16x256xi1>, vector<16x256xf32>
    %c0_142 = arith.constant 0 : index
    %c0_143 = arith.constant 0 : index
    %154 = vector.load %arg7[%c0_142, %c0_143] : memref<144x256xf32, #tpu.memory_space<vmem>>, vector<16x256xf32>
    tpu.vector_store %arg7[%c0_142, %c0_143], %153 {strides = array<i32>} : memref<144x256xf32, #tpu.memory_space<vmem>>, vector<16x256xf32>,
    %c0_144 = arith.constant 0 : index
    %c1_145 = arith.constant 1 : index
    %155 = vector.load %arg6[%c0_144, %c1_145] : memref<16x290xf32, #tpu.memory_space<vmem>>, vector<16x256xf32>
    %c16_146 = arith.constant 16 : index
    %c0_147 = arith.constant 0 : index
    %156 = vector.load %arg7[%c16_146, %c0_147] : memref<144x256xf32, #tpu.memory_space<vmem>>, vector<16x256xf32>
    tpu.vector_store %arg7[%c16_146, %c0_147], %155 {strides = array<i32>} : memref<144x256xf32, #tpu.memory_space<vmem>>, vector<16x256xf32>,
    %c0_148 = arith.constant 0 : index
    %c2_149 = arith.constant 2 : index
    %157 = vector.load %arg6[%c0_148, %c2_149] : memref<16x290xf32, #tpu.memory_space<vmem>>, vector<16x256xf32>
    %cst_150 = arith.constant 0.000000e+00 : f32
    %158 = vector.broadcast %cst_150 : f32 to vector<16x256xf32>
    %159 = arith.select %37, %157, %158 : vector<16x256xi1>, vector<16x256xf32>
    %c32_151 = arith.constant 32 : index
    %c0_152 = arith.constant 0 : index
    %160 = vector.load %arg7[%c32_151, %c0_152] : memref<144x256xf32, #tpu.memory_space<vmem>>, vector<16x256xf32>
    tpu.vector_store %arg7[%c32_151, %c0_152], %159 {strides = array<i32>} : memref<144x256xf32, #tpu.memory_space<vmem>>, vector<16x256xf32>,
    %c0_153 = arith.constant 0 : index
    %c16_154 = arith.constant 16 : index
    %161 = vector.load %arg6[%c0_153, %c16_154] : memref<16x290xf32, #tpu.memory_space<vmem>>, vector<16x256xf32>
    %cst_155 = arith.constant 0.000000e+00 : f32
    %162 = vector.broadcast %cst_155 : f32 to vector<16x256xf32>
    %163 = arith.select %33, %161, %162 : vector<16x256xi1>, vector<16x256xf32>
    %c48_156 = arith.constant 48 : index
    %c0_157 = arith.constant 0 : index
    %164 = vector.load %arg7[%c48_156, %c0_157] : memref<144x256xf32, #tpu.memory_space<vmem>>, vector<16x256xf32>
    tpu.vector_store %arg7[%c48_156, %c0_157], %163 {strides = array<i32>} : memref<144x256xf32, #tpu.memory_space<vmem>>, vector<16x256xf32>,
    %c0_158 = arith.constant 0 : index
    %c17_159 = arith.constant 17 : index
    %165 = vector.load %arg6[%c0_158, %c17_159] : memref<16x290xf32, #tpu.memory_space<vmem>>, vector<16x256xf32>
    %c64_160 = arith.constant 64 : index
    %c0_161 = arith.constant 0 : index
    %166 = vector.load %arg7[%c64_160, %c0_161] : memref<144x256xf32, #tpu.memory_space<vmem>>, vector<16x256xf32>
    tpu.vector_store %arg7[%c64_160, %c0_161], %165 {strides = array<i32>} : memref<144x256xf32, #tpu.memory_space<vmem>>, vector<16x256xf32>,
    %c0_162 = arith.constant 0 : index
    %c18_163 = arith.constant 18 : index
    %167 = vector.load %arg6[%c0_162, %c18_163] : memref<16x290xf32, #tpu.memory_space<vmem>>, vector<16x256xf32>
    %cst_164 = arith.constant 0.000000e+00 : f32
    %168 = vector.broadcast %cst_164 : f32 to vector<16x256xf32>
    %169 = arith.select %37, %167, %168 : vector<16x256xi1>, vector<16x256xf32>
    %c80_165 = arith.constant 80 : index
    %c0_166 = arith.constant 0 : index
    %170 = vector.load %arg7[%c80_165, %c0_166] : memref<144x256xf32, #tpu.memory_space<vmem>>, vector<16x256xf32>
    tpu.vector_store %arg7[%c80_165, %c0_166], %169 {strides = array<i32>} : memref<144x256xf32, #tpu.memory_space<vmem>>, vector<16x256xf32>,
    %c0_167 = arith.constant 0 : index
    %c32_168 = arith.constant 32 : index
    %171 = vector.load %arg6[%c0_167, %c32_168] : memref<16x290xf32, #tpu.memory_space<vmem>>, vector<16x256xf32>
    %cst_169 = arith.constant 0.000000e+00 : f32
    %172 = vector.broadcast %cst_169 : f32 to vector<16x256xf32>
    %173 = arith.select %33, %171, %172 : vector<16x256xi1>, vector<16x256xf32>
    %c96_170 = arith.constant 96 : index
    %c0_171 = arith.constant 0 : index
    %174 = vector.load %arg7[%c96_170, %c0_171] : memref<144x256xf32, #tpu.memory_space<vmem>>, vector<16x256xf32>
    tpu.vector_store %arg7[%c96_170, %c0_171], %173 {strides = array<i32>} : memref<144x256xf32, #tpu.memory_space<vmem>>, vector<16x256xf32>,
    %c0_172 = arith.constant 0 : index
    %c33_173 = arith.constant 33 : index
    %175 = vector.load %arg6[%c0_172, %c33_173] : memref<16x290xf32, #tpu.memory_space<vmem>>, vector<16x256xf32>
    %c112_174 = arith.constant 112 : index
    %c0_175 = arith.constant 0 : index
    %176 = vector.load %arg7[%c112_174, %c0_175] : memref<144x256xf32, #tpu.memory_space<vmem>>, vector<16x256xf32>
    tpu.vector_store %arg7[%c112_174, %c0_175], %175 {strides = array<i32>} : memref<144x256xf32, #tpu.memory_space<vmem>>, vector<16x256xf32>,
    %c0_176 = arith.constant 0 : index
    %c34_177 = arith.constant 34 : index
    %177 = vector.load %arg6[%c0_176, %c34_177] : memref<16x290xf32, #tpu.memory_space<vmem>>, vector<16x256xf32>
    %cst_178 = arith.constant 0.000000e+00 : f32
    %178 = vector.broadcast %cst_178 : f32 to vector<16x256xf32>
    %179 = arith.select %37, %177, %178 : vector<16x256xi1>, vector<16x256xf32>
    %c128_179 = arith.constant 128 : index
    %c0_180 = arith.constant 0 : index
    %180 = vector.load %arg7[%c128_179, %c0_180] : memref<144x256xf32, #tpu.memory_space<vmem>>, vector<16x256xf32>
    tpu.vector_store %arg7[%c128_179, %c0_180], %179 {strides = array<i32>} : memref<144x256xf32, #tpu.memory_space<vmem>>, vector<16x256xf32>,
    %c2_181 = arith.constant 2 : index
    %c0_182 = arith.constant 0 : index
    %c0_183 = arith.constant 0 : index
    %181 = vector.load %arg4[%c2_181, %c0_182, %c0_183] : memref<3x4x144xf32, #tpu.memory_space<vmem>>, vector<1x4x144xf32>
    %182 = vector.shape_cast %181 : vector<1x4x144xf32> to vector<4x144xf32>
    %c0_184 = arith.constant 0 : index
    %c0_185 = arith.constant 0 : index
    %183 = vector.load %arg7[%c0_184, %c0_185] : memref<144x256xf32, #tpu.memory_space<vmem>>, vector<144x256xf32>
    %cst_186 = arith.constant dense<0.000000e+00> : vector<4x256xf32>
    %184 = tpu.matmul %182, %183, %cst_186 {dimension_numbers = #tpu.dot_dimension_numbers<[1], [0], [0], [1], [0, 0, 1, 1], [], []>} : vector<4x144xf32>, vector<144x256xf32>, vector<4x256xf32> -> vector<4x256xf32>
    %c0_187 = arith.constant 0 : index
    %c12 = arith.constant 12 : index
    %c0_188 = arith.constant 0 : index
    %185 = vector.load %arg5[%c0_187, %c12, %c0_188] : memref<1x16x256xf32, #tpu.memory_space<vmem>>, vector<1x4x256xf32>
    %186 = vector.shape_cast %185 : vector<1x4x256xf32> to vector<4x256xf32>
    %187 = vector.shape_cast %184 : vector<4x256xf32> to vector<1x4x256xf32>
    tpu.vector_store %arg5[%c0_187, %c12, %c0_188], %187 {strides = array<i32>} : memref<1x16x256xf32, #tpu.memory_space<vmem>>, vector<1x4x256xf32>,
    return
  }
  func.func @transform_0(%arg0: i32) -> (i32, i32, i32) {
    %c0_i32 = arith.constant 0 : i32
    %c0_i32_0 = arith.constant 0 : i32
    %c0_i32_1 = arith.constant 0 : i32
    return %arg0, %c0_i32, %c0_i32_0 : i32, i32, i32
  }
  func.func @transform_1(%arg0: i32) -> (i32, i32, i32) {
    %c0_i32 = arith.constant 0 : i32
    %c0_i32_0 = arith.constant 0 : i32
    %c0_i32_1 = arith.constant 0 : i32
    %c0_i32_2 = arith.constant 0 : i32
    return %c0_i32, %c0_i32_0, %c0_i32_1 : i32, i32, i32
  }
  func.func @transform_2(%arg0: i32) -> (i32, i32, i32) {
    %c0_i32 = arith.constant 0 : i32
    %c0_i32_0 = arith.constant 0 : i32
    %c0_i32_1 = arith.constant 0 : i32
    %c0_i32_2 = arith.constant 0 : i32
    return %c0_i32, %c0_i32_0, %c0_i32_1 : i32, i32, i32
  }
  func.func @transform_3(%arg0: i32) -> (i32, i32, i32) {
    %c0_i32 = arith.constant 0 : i32
    %c0_i32_0 = arith.constant 0 : i32
    %c0_i32_1 = arith.constant 0 : i32
    %c0_i32_2 = arith.constant 0 : i32
    return %c0_i32, %c0_i32_0, %c0_i32_1 : i32, i32, i32
  }
  func.func @transform_4(%arg0: i32) -> (i32, i32, i32) {
    %c0_i32 = arith.constant 0 : i32
    %c0_i32_0 = arith.constant 0 : i32
    %c0_i32_1 = arith.constant 0 : i32
    return %arg0, %c0_i32, %c0_i32_0 : i32, i32, i32
  }
}

</mosaic_0001>

<llo_original>
// kernel: tpu_custom_call.1
$region0: #{tpu_custom_call.1}
  #allocation0 [shape = 'u32[]', space=smem, size = 0x4, offset = 0x4, fixed_abs, tag = 'smem constant byte address 0x4 - core index']
  #allocation1 [shape = 'u32[72,128]{1,0:T(1,128)}', space=vmem, size = 0x9000, scoped, tag = 'internal scratch']
  #allocation2 [shape = 'f32[16,290]{1,0:T(8,128)}', space=vmem, size = 0x6000, scoped, tag = 'scratch operand']
  #allocation3 [shape = 'f32[144,256]{1,0:T(8,128)}', space=vmem, size = 0x24000, scoped, tag = 'scratch operand']
  %s0 = inlined_call_operand.vmem [shape: f32[2,4,256], index: 0, kind: input, shape index: {}]
  %s1 = inlined_call_operand.vmem [shape: f32[3,16,1], index: 1, kind: input, shape index: {}]
  %s2 = inlined_call_operand.vmem [shape: f32[3,16,1], index: 2, kind: input, shape index: {}]
  %s3 = inlined_call_operand.vmem [shape: f32[3,4,144], index: 3, kind: input, shape index: {}]
  %s4 = inlined_call_operand.hbm [shape: f32[2,16,256], index: 4, kind: output, shape index: {}]
  %s5 = sld [smem:[#allocation0]]
  $region49: #{tpu_custom_call.1} parent=0
    _
  %s7 = ssub.s32 1, %s5
  %s8 = scalar_select 0, %s7, %s5
  $region1: #{tpu_custom_call.1} parent=0
    #allocation4 [shape = 'u8[32768]{0}', space=vmem, size = 0x8000, scoped, tag = 'output window, operand 0']
    #allocation5 [shape = 's32[2]{0}', space=sflag, size = 0x8, scoped, tag = 'scoped memory for tpu_custom_call.1']
    %9 = vsyncpa [#allocation5], 0
    %s10 = scalar_lea.sflag [#allocation5], 1
    %11 = vsyncpa %s10, 0
    loop: start=0, step=1, limit=4
    $region2: #{tpu_custom_call.1} parent=1 // loop_pre_header
      _
    $region3: #{tpu_custom_call.1} parent=1 // loop_header
      %s13 = sphi 0, %s17
      %p14 = scmp.ge.s32.totalorder %s13, 4
      %s23 = sphi 0, %s25
      %s26 = sphi 0, %s23
      %s27 = sphi 0, %s26
      %s43 = sphi 0, %s27
      %s47 = sphi 0, %s47
      %s49 = sphi 0, %s47
      %s50 = sphi 0, %s49
      %s64 = sphi 0, %s50
      %s68 = sphi 0, %s68
      %s70 = sphi 0, %s68
      %s71 = sphi 0, %s70
      %s85 = sphi 0, %s71
      %s89 = sphi 0, %s89
      %s91 = sphi 0, %s89
      %s92 = sphi 0, %s91
      %s106 = sphi 0, %s92
      %s112 = sphi 0, %s114
      %s115 = sphi 0, %s112
      %s116 = sphi 0, %s115
      %s132 = sphi 0, %s116
    $region4: #{tpu_custom_call.1} parent=1 // loop_header_branch
      %16 = sbr.rel (%p14) target = $region8
    $region5: #{tpu_custom_call.1} parent=1 // loop_body
      %s18 = ssub.s32 %s13, 1
      %s19 = ssub.s32 %s13, 2
      %s20 = sadd.s32 %s13, 1
      %s21 = ssub.s32 %s13, %s20
      %p22 = scmp.eq.s32.totalorder %s21, 0
      %s24 = sadd.s32 %s23, 1
      %s25 = scalar_select %p22, %s23, %s24
      %p28 = pneg %p22
      %p29 = scmp.eq.s32.totalorder %s13, 1
      %p30 = por %p28, %p29
      %p31 = scmp.ne.s32.totalorder %s23, %s26
      %p32 = scmp.eq.s32.totalorder %s13, 0
      %p33 = por %p31, %p32
      %p34 = scmp.ne.s32.totalorder %s23, %s26
      %p35 = scmp.eq.s32.totalorder %s18, 1
      %p36 = por %p34, %p35
      %p37 = scmp.ne.s32.totalorder %s26, %s27
      %p38 = scmp.eq.s32.totalorder %s18, 0
      %p39 = por %p37, %p38
      %p40 = scmp.ne.s32.totalorder %s26, %s27
      %p41 = scmp.eq.s32.totalorder %s19, 1
      %p42 = por %p40, %p41
      %p44 = scmp.ne.s32.totalorder %s27, %s43
      %p45 = scmp.eq.s32.totalorder %s19, 0
      %p46 = por %p44, %p45
      %s48 = sadd.s32 %s47, 1
      %p51 = scmp.eq.s32.totalorder %s13, 1
      %p52 = scmp.ne.s32.totalorder %s47, %s49
      %p53 = scmp.eq.s32.totalorder %s13, 0
      %p54 = por %p52, %p53
      %p55 = scmp.ne.s32.totalorder %s47, %s49
      %p56 = scmp.eq.s32.totalorder %s18, 1
      %p57 = por %p55, %p56
      %p58 = scmp.ne.s32.totalorder %s49, %s50
      %p59 = scmp.eq.s32.totalorder %s18, 0
      %p60 = por %p58, %p59
      %p61 = scmp.ne.s32.totalorder %s49, %s50
      %p62 = scmp.eq.s32.totalorder %s19, 1
      %p63 = por %p61, %p62
      %p65 = scmp.ne.s32.totalorder %s50, %s64
      %p66 = scmp.eq.s32.totalorder %s19, 0
      %p67 = por %p65, %p66
      %s69 = sadd.s32 %s68, 1
      %p72 = scmp.eq.s32.totalorder %s13, 1
      %p73 = scmp.ne.s32.totalorder %s68, %s70
      %p74 = scmp.eq.s32.totalorder %s13, 0
      %p75 = por %p73, %p74
      %p76 = scmp.ne.s32.totalorder %s68, %s70
      %p77 = scmp.eq.s32.totalorder %s18, 1
      %p78 = por %p76, %p77
      %p79 = scmp.ne.s32.totalorder %s70, %s71
      %p80 = scmp.eq.s32.totalorder %s18, 0
      %p81 = por %p79, %p80
      %p82 = scmp.ne.s32.totalorder %s70, %s71
      %p83 = scmp.eq.s32.totalorder %s19, 1
      %p84 = por %p82, %p83
      %p86 = scmp.ne.s32.totalorder %s71, %s85
      %p87 = scmp.eq.s32.totalorder %s19, 0
      %p88 = por %p86, %p87
      %s90 = sadd.s32 %s89, 1
      %p93 = scmp.eq.s32.totalorder %s13, 1
      %p94 = scmp.ne.s32.totalorder %s89, %s91
      %p95 = scmp.eq.s32.totalorder %s13, 0
      %p96 = por %p94, %p95
      %p97 = scmp.ne.s32.totalorder %s89, %s91
      %p98 = scmp.eq.s32.totalorder %s18, 1
      %p99 = por %p97, %p98
      %p100 = scmp.ne.s32.totalorder %s91, %s92
      %p101 = scmp.eq.s32.totalorder %s18, 0
      %p102 = por %p100, %p101
      %p103 = scmp.ne.s32.totalorder %s91, %s92
      %p104 = scmp.eq.s32.totalorder %s19, 1
      %p105 = por %p103, %p104
      %p107 = scmp.ne.s32.totalorder %s92, %s106
      %p108 = scmp.eq.s32.totalorder %s19, 0
      %p109 = por %p107, %p108
      %s110 = ssub.s32 %s13, %s20
      %p111 = scmp.eq.s32.totalorder %s110, 0
      %s113 = sadd.s32 %s112, 1
      %s114 = scalar_select %p111, %s112, %s113
      %p117 = pneg %p111
      %p118 = scmp.eq.s32.totalorder %s13, 1
      %p119 = por %p117, %p118
      %p120 = scmp.ne.s32.totalorder %s112, %s115
      %p121 = scmp.eq.s32.totalorder %s13, 0
      %p122 = por %p120, %p121
      %p123 = scmp.ne.s32.totalorder %s112, %s115
      %p124 = scmp.eq.s32.totalorder %s18, 1
      %p125 = por %p123, %p124
      %p126 = scmp.ne.s32.totalorder %s115, %s116
      %p127 = scmp.eq.s32.totalorder %s18, 0
      %p128 = por %p126, %p127
      %p129 = scmp.ne.s32.totalorder %s115, %s116
      %p130 = scmp.eq.s32.totalorder %s19, 1
      %p131 = por %p129, %p130
      %p133 = scmp.ne.s32.totalorder %s116, %s132
      %p134 = scmp.eq.s32.totalorder %s19, 0
      %p135 = por %p133, %p134
      %p136 = scmp.le.s32.totalorder 1, %s13
      %p137 = scmp.lt.s32.totalorder %s13, 3
      %p138 = pnand %p136, %p137
      %p139 = pneg %p138
      // Predicated region
      $region9: #{tpu_custom_call.1} parent=5 // pred_check
        _
      $region10: #{tpu_custom_call.1} parent=5 // pred_check_branch
        %141 = sbr.rel (%p138) target = $region12
      $region11: #{tpu_custom_call.1} parent=5 // pred_region
        %s142 = ssub.s32 %s13, 1
        // Predicated region
        $region13: #{tpu_custom_call.1} parent=11 // pred_check
          %p143 = pneg %p60
        $region14: #{tpu_custom_call.1} parent=11 // pred_check_branch
          %145 = sbr.rel (%p143) target = $region16
        $region15: #{tpu_custom_call.1} parent=11 // pred_region
          _
        $region16: #{tpu_custom_call.1} parent=11 // pred_fallthru
          _
        // Predicated region
        $region17: #{tpu_custom_call.1} parent=11 // pred_check
          %p146 = pneg %p81
        $region18: #{tpu_custom_call.1} parent=11 // pred_check_branch
          %148 = sbr.rel (%p146) target = $region20
        $region19: #{tpu_custom_call.1} parent=11 // pred_region
          _
        $region20: #{tpu_custom_call.1} parent=11 // pred_fallthru
          _
        // Predicated region
        $region21: #{tpu_custom_call.1} parent=11 // pred_check
          %p149 = pneg %p102
        $region22: #{tpu_custom_call.1} parent=11 // pred_check_branch
          %151 = sbr.rel (%p149) target = $region24
        $region23: #{tpu_custom_call.1} parent=11 // pred_region
          _
        $region24: #{tpu_custom_call.1} parent=11 // pred_fallthru
          _
      $region12: #{tpu_custom_call.1} parent=5 // pred_fallthru
        _
      %p152 = scmp.lt.s32.totalorder %s13, 2
      // Predicated region
      $region25: #{tpu_custom_call.1} parent=5 // pred_check
        %p153 = pneg %p152
      $region26: #{tpu_custom_call.1} parent=5 // pred_check_branch
        %155 = sbr.rel (%p153) target = $region28
      $region27: #{tpu_custom_call.1} parent=5 // pred_region
        // Predicated region
        $region29: #{tpu_custom_call.1} parent=27 // pred_check
          %p156 = pneg %p33
        $region30: #{tpu_custom_call.1} parent=27 // pred_check_branch
          %158 = sbr.rel (%p156) target = $region32
        $region31: #{tpu_custom_call.1} parent=27 // pred_region
          %p159 = scmp.lt.s32.totalorder %s13, 1
          %s160 = scalar_select %p159, %s13, 1
          %s161 = smul.addr %s160, 2
          %s162 = smul.addr %s161, 4
          %s163 = scalar_lea.vmem %s0, %s162
        $region32: #{tpu_custom_call.1} parent=27 // pred_fallthru
          _
      $region28: #{tpu_custom_call.1} parent=5 // pred_fallthru
        _
      %p164 = scmp.le.s32.totalorder 1, %s13
      %p165 = scmp.lt.s32.totalorder %s13, 3
      %p166 = pnand %p164, %p165
      %p167 = pneg %p166
      // Predicated region
      $region33: #{tpu_custom_call.1} parent=5 // pred_check
        _
      $region34: #{tpu_custom_call.1} parent=5 // pred_check_branch
        %169 = sbr.rel (%p166) target = $region36
      $region35: #{tpu_custom_call.1} parent=5 // pred_region
        %s170 = ssub.s32 %s13, 1
        %p171 = scmp.lt.s32.totalorder %s18, 1
        %s172 = scalar_select %p171, %s18, 1
        %s173 = smul.addr %s172, 2
        %s174 = smul.addr %s173, 4
        %s175 = scalar_lea.vmem %s0, %s174
        %p176 = pneg %p39
        %p177 = pneg %p36
        %p178 = pneg %p60
        %p179 = pneg %p57
        %p180 = pneg %p81
        %p181 = pneg %p78
        %p182 = pneg %p102
        %p183 = pneg %p99
        %p184 = pneg %p128
        %p185 = pneg %p125
        %s186 = sand.u32 %s115, 1
        %s187 = scalar_lea.sflag [#allocation5], %s186
        %s188 = sand.u32 %s115, 1
        %s189 = smul.addr %s188, 32
        %s190 = scalar_lea.vmem [#allocation4], %s189
        %p191 = scmp.lt.s32.totalorder %s18, 1
        %s192 = scalar_select %p191, %s18, 1
        %s193 = smul.addr %s192, 2
        %s194 = smul.addr %s193, 4
        %s195 = scalar_lea.vmem %s0, %s194
        %v196 = vld [vmem:[%s195] sm:$0xff]
        %198 = vst [vmem:[#allocation1] ss:$2 sm:$0xff] %v196
        %v199 = vld.sshfl [vmem:[#allocation1] sm:$0xff pattern:$0x75316420]
        %v200 = vld.sshfl [vmem:[#allocation1 + $0x8] sm:$0xff pattern:$0x75316420]
        %203 = vst [vmem:[%s190] sm:$0xf] %v199
        %204 = vst [vmem:[%s190 + $0x8] sm:$0xf] %v200
        %205 = vst [vmem:[%s190] sm:$0xf0] 0.0
        %206 = vst [vmem:[%s190 + $0x8] sm:$0xf0] 0.0
        %207 = vst [vmem:[%s190 + $0x10] sm:$0xff] 0.0
        %208 = vst [vmem:[%s190 + $0x18] sm:$0xff] 0.0
        %vm209 = vcmask 138240
        %210 = vst.msk [vmem:[#allocation2] sm:$0xff] %vm209, 0.0
        %211 = vst.msk [vmem:[#allocation2 + $0x18] sm:$0xff] %vm209, 0.0
        %vm212 = vcmask 277640
        %213 = vst.msk [vmem:[#allocation2 + $0x10] sm:$0xff] %vm212, 0.0
        %214 = vst.msk [vmem:[#allocation2 + $0x28] sm:$0xff] %vm212, 0.0
        %v215 = vlaneseq
        %v216 = vand.u32 %v215, 127
        %v217 = vadd.s32 %v216, 128
        %vm218 = vcmp.lt.s32.totalorder %v216, 0
        %v219 = vsub.s32 0, %v216
        %v220 = vsel %vm218, %v219, %v216
        %v221 = vshrl.u32 %v220, 4
        %v222 = vand.u32 %v220, 15
        %v223 = vsub.s32 0, %v222
        %v224 = vsel %vm218, %v223, %v222
        %vm225 = vcmp.lt.s32.totalorder %v217, 0
        %v226 = vsub.s32 0, %v217
        %v227 = vsel %vm225, %v226, %v217
        %v228 = vshrl.u32 %v227, 4
        %v229 = vand.u32 %v227, 15
        %v230 = vsub.s32 0, %v229
        %v231 = vsel %vm225, %v230, %v229
        %vm232 = vcmp.ne.s32.totalorder %v224, 0
        %vm233 = vcmp.ne.s32.totalorder %v231, 0
        %vm234 = vcmp.lt.s32.totalorder %v224, 0
        %vm235 = vcmp.lt.s32.totalorder %v231, 0
        %vm236 = vmand %vm234, %vm232
        %vm237 = vmand %vm235, %vm233
        %v238 = vadd.s32 %v224, 16
        %v239 = vadd.s32 %v231, 16
        %v240 = vsel %vm236, %v238, %v224
        %v241 = vsel %vm237, %v239, %v231
        %vm242 = vcmp.ne.s32.totalorder %v240, 0
        %vm243 = vcmp.ne.s32.totalorder %v241, 0
        %v244 = vsel %vm242, 1, 0
        %v245 = vsel %vm243, 1, 0
        %vm246 = vcmp.eq.s32.totalorder %v244, 1
        %vm247 = vcmp.eq.s32.totalorder %v245, 1
        %vm248 = vcmp.ne.s32.totalorder %v240, 15
        %vm249 = vcmp.ne.s32.totalorder %v241, 15
        %v250 = vsel %vm248, 1, 0
        %v251 = vsel %vm249, 1, 0
        %vm252 = vcmp.eq.s32.totalorder %v250, 1
        %vm253 = vcmp.eq.s32.totalorder %v251, 1
        %v254 = vld [vmem:[%s190] sm:$0xff]
        %v255 = vld [vmem:[%s190 + $0x8] sm:$0xff]
        %v256 = vld [vmem:[%s190 + $0x10] sm:$0xff]
        %v257 = vld [vmem:[%s190 + $0x18] sm:$0xff]
        %v258 = vld [vmem:[%s1] sm:$0xff]
        %v259 = vld [vmem:[%s1 + $0x8] sm:$0xff]
        %261 = vset.pattern.permute.xlu0 0
        %262 = vperm.xlu0 %261, %v258
        %v263 = vpop.permute.xlu0 %262
        %266 = vset.pattern.permute.xlu0 0
        %267 = vperm.xlu0 %266, %v259
        %v268 = vpop.permute.xlu0 %267
        %v270 = vmul.f32 %v254, %v263
        %v271 = vmul.f32 %v255, %v263
        %v272 = vmul.f32 %v256, %v268
        %v273 = vmul.f32 %v257, %v268
        %v274 = vld [vmem:[%s2] sm:$0xff]
        %v275 = vld [vmem:[%s2 + $0x8] sm:$0xff]
        %277 = vset.pattern.permute.xlu0 0
        %278 = vperm.xlu0 %277, %v274
        %v279 = vpop.permute.xlu0 %278
        %282 = vset.pattern.permute.xlu0 0
        %283 = vperm.xlu0 %282, %v275
        %v284 = vpop.permute.xlu0 %283
        %v286 = vadd.f32 %v270, %v279
        %v287 = vadd.f32 %v271, %v279
        %v288 = vadd.f32 %v272, %v284
        %v289 = vadd.f32 %v273, %v284
        %v290 = vmax.f32 %v286, 0.0
        %v291 = vmax.f32 %v287, 0.0
        %v292 = vmax.f32 %v288, 0.0
        %v293 = vmax.f32 %v289, 0.0
        %298 = vrot.lane.b32.xlu0 %v290, 17
        %v299 = vpop.permute.xlu0 %298
        %300 = vrot.lane.b32.xlu0 %v291, 17
        %v301 = vpop.permute.xlu0 %300
        %302 = vrot.lane.b32.xlu0 %v292, 17
        %v303 = vpop.permute.xlu0 %302
        %304 = vrot.lane.b32.xlu0 %v293, 17
        %v305 = vpop.permute.xlu0 %304
        %v306 = vsel %vm209, %v299, %v301
        %v307 = vsel %vm209, %v303, %v305
        %vm314 = vcmask 1047688
        %315 = vst.msk [vmem:[#allocation2] sm:$0xff] %vm314, %v299
        %316 = vst [vmem:[#allocation2 + $0x8] sm:$0xff] %v306
        %317 = vst.msk [vmem:[#allocation2 + $0x10] sm:$0xff] %vm209, %v301
        %318 = vst.msk [vmem:[#allocation2 + $0x18] sm:$0xff] %vm314, %v303
        %319 = vst [vmem:[#allocation2 + $0x20] sm:$0xff] %v307
        %320 = vst.msk [vmem:[#allocation2 + $0x28] sm:$0xff] %vm209, %v305
        %v321 = vld [vmem:[#allocation2] sm:$0xff]
        %v322 = vld [vmem:[#allocation2 + $0x8] sm:$0xff]
        %v323 = vld [vmem:[#allocation2 + $0x18] sm:$0xff]
        %v324 = vld [vmem:[#allocation2 + $0x20] sm:$0xff]
        %v325 = vsel %vm246, %v321, 0.0
        %v326 = vsel %vm247, %v322, 0.0
        %v327 = vsel %vm246, %v323, 0.0
        %v328 = vsel %vm247, %v324, 0.0
        %329 = vst [vmem:[#allocation3] sm:$0xff] %v325
        %330 = vst [vmem:[#allocation3 + $0x8] sm:$0xff] %v326
        %331 = vst [vmem:[#allocation3 + $0x10] sm:$0xff] %v327
        %332 = vst [vmem:[#allocation3 + $0x18] sm:$0xff] %v328
        %v333 = vld [vmem:[#allocation2] sm:$0xff]
        %v334 = vld [vmem:[#allocation2 + $0x8] sm:$0xff]
        %v335 = vld [vmem:[#allocation2 + $0x10] sm:$0xff]
        %v336 = vld [vmem:[#allocation2 + $0x18] sm:$0xff]
        %v337 = vld [vmem:[#allocation2 + $0x20] sm:$0xff]
        %v338 = vld [vmem:[#allocation2 + $0x28] sm:$0xff]
        %345 = vrot.lane.b32.xlu0 %v333, 127
        %v346 = vpop.permute.xlu0 %345
        %347 = vrot.lane.b32.xlu0 %v334, 127
        %v348 = vpop.permute.xlu0 %347
        %349 = vrot.lane.b32.xlu0 %v335, 127
        %v350 = vpop.permute.xlu0 %349
        %351 = vrot.lane.b32.xlu0 %v336, 127
        %v352 = vpop.permute.xlu0 %351
        %353 = vrot.lane.b32.xlu0 %v337, 127
        %v354 = vpop.permute.xlu0 %353
        %355 = vrot.lane.b32.xlu0 %v338, 127
        %v356 = vpop.permute.xlu0 %355
        %vm357 = vcmask 1039360
        %v358 = vsel %vm357, %v346, %v348
        %v359 = vsel %vm357, %v348, %v350
        %v360 = vsel %vm357, %v352, %v354
        %v361 = vsel %vm357, %v354, %v356
        %366 = vst [vmem:[#allocation3 + $0x20] sm:$0xff] %v358
        %367 = vst [vmem:[#allocation3 + $0x28] sm:$0xff] %v359
        %368 = vst [vmem:[#allocation3 + $0x30] sm:$0xff] %v360
        %369 = vst [vmem:[#allocation3 + $0x38] sm:$0xff] %v361
        %v370 = vld [vmem:[#allocation2] sm:$0xff]
        %v371 = vld [vmem:[#allocation2 + $0x8] sm:$0xff]
        %v372 = vld [vmem:[#allocation2 + $0x10] sm:$0xff]
        %v373 = vld [vmem:[#allocation2 + $0x18] sm:$0xff]
        %v374 = vld [vmem:[#allocation2 + $0x20] sm:$0xff]
        %v375 = vld [vmem:[#allocation2 + $0x28] sm:$0xff]
        %382 = vrot.lane.b32.xlu0 %v370, 126
        %v383 = vpop.permute.xlu0 %382
        %384 = vrot.lane.b32.xlu0 %v371, 126
        %v385 = vpop.permute.xlu0 %384
        %386 = vrot.lane.b32.xlu0 %v372, 126
        %v387 = vpop.permute.xlu0 %386
        %388 = vrot.lane.b32.xlu0 %v373, 126
        %v389 = vpop.permute.xlu0 %388
        %390 = vrot.lane.b32.xlu0 %v374, 126
        %v391 = vpop.permute.xlu0 %390
        %392 = vrot.lane.b32.xlu0 %v375, 126
        %v393 = vpop.permute.xlu0 %392
        %vm394 = vcmask 1031168
        %v395 = vsel %vm394, %v383, %v385
        %v396 = vsel %vm394, %v385, %v387
        %v397 = vsel %vm394, %v389, %v391
        %v398 = vsel %vm394, %v391, %v393
        %v403 = vsel %vm252, %v395, 0.0
        %v404 = vsel %vm253, %v396, 0.0
        %v405 = vsel %vm252, %v397, 0.0
        %v406 = vsel %vm253, %v398, 0.0
        %407 = vst [vmem:[#allocation3 + $0x40] sm:$0xff] %v403
        %408 = vst [vmem:[#allocation3 + $0x48] sm:$0xff] %v404
        %409 = vst [vmem:[#allocation3 + $0x50] sm:$0xff] %v405
        %410 = vst [vmem:[#allocation3 + $0x58] sm:$0xff] %v406
        %v411 = vld [vmem:[#allocation2] sm:$0xff]
        %v412 = vld [vmem:[#allocation2 + $0x8] sm:$0xff]
        %v413 = vld [vmem:[#allocation2 + $0x10] sm:$0xff]
        %v414 = vld [vmem:[#allocation2 + $0x18] sm:$0xff]
        %v415 = vld [vmem:[#allocation2 + $0x20] sm:$0xff]
        %v416 = vld [vmem:[#allocation2 + $0x28] sm:$0xff]
        %423 = vrot.lane.b32.xlu0 %v411, 112
        %v424 = vpop.permute.xlu0 %423
        %425 = vrot.lane.b32.xlu0 %v412, 112
        %v426 = vpop.permute.xlu0 %425
        %427 = vrot.lane.b32.xlu0 %v413, 112
        %v428 = vpop.permute.xlu0 %427
        %429 = vrot.lane.b32.xlu0 %v414, 112
        %v430 = vpop.permute.xlu0 %429
        %431 = vrot.lane.b32.xlu0 %v415, 112
        %v432 = vpop.permute.xlu0 %431
        %433 = vrot.lane.b32.xlu0 %v416, 112
        %v434 = vpop.permute.xlu0 %433
        %vm435 = vcmask 916480
        %v436 = vsel %vm435, %v424, %v426
        %v437 = vsel %vm435, %v426, %v428
        %v438 = vsel %vm435, %v430, %v432
        %v439 = vsel %vm435, %v432, %v434
        %v444 = vsel %vm246, %v436, 0.0
        %v445 = vsel %vm247, %v437, 0.0
        %v446 = vsel %vm246, %v438, 0.0
        %v447 = vsel %vm247, %v439, 0.0
        %448 = vst [vmem:[#allocation3 + $0x60] sm:$0xff] %v444
        %449 = vst [vmem:[#allocation3 + $0x68] sm:$0xff] %v445
        %450 = vst [vmem:[#allocation3 + $0x70] sm:$0xff] %v446
        %451 = vst [vmem:[#allocation3 + $0x78] sm:$0xff] %v447
        %v452 = vld [vmem:[#allocation2] sm:$0xff]
        %v453 = vld [vmem:[#allocation2 + $0x8] sm:$0xff]
        %v454 = vld [vmem:[#allocation2 + $0x10] sm:$0xff]
        %v455 = vld [vmem:[#allocation2 + $0x18] sm:$0xff]
        %v456 = vld [vmem:[#allocation2 + $0x20] sm:$0xff]
        %v457 = vld [vmem:[#allocation2 + $0x28] sm:$0xff]
        %464 = vrot.lane.b32.xlu0 %v452, 111
        %v465 = vpop.permute.xlu0 %464
        %466 = vrot.lane.b32.xlu0 %v453, 111
        %v467 = vpop.permute.xlu0 %466
        %468 = vrot.lane.b32.xlu0 %v454, 111
        %v469 = vpop.permute.xlu0 %468
        %470 = vrot.lane.b32.xlu0 %v455, 111
        %v471 = vpop.permute.xlu0 %470
        %472 = vrot.lane.b32.xlu0 %v456, 111
        %v473 = vpop.permute.xlu0 %472
        %474 = vrot.lane.b32.xlu0 %v457, 111
        %v475 = vpop.permute.xlu0 %474
        %vm476 = vcmask 908288
        %v477 = vsel %vm476, %v465, %v467
        %v478 = vsel %vm476, %v467, %v469
        %v479 = vsel %vm476, %v471, %v473
        %v480 = vsel %vm476, %v473, %v475
        %485 = vst [vmem:[#allocation3 + $0x80] sm:$0xff] %v477
        %486 = vst [vmem:[#allocation3 + $0x88] sm:$0xff] %v478
        %487 = vst [vmem:[#allocation3 + $0x90] sm:$0xff] %v479
        %488 = vst [vmem:[#allocation3 + $0x98] sm:$0xff] %v480
        %v489 = vld [vmem:[#allocation2] sm:$0xff]
        %v490 = vld [vmem:[#allocation2 + $0x8] sm:$0xff]
        %v491 = vld [vmem:[#allocation2 + $0x10] sm:$0xff]
        %v492 = vld [vmem:[#allocation2 + $0x18] sm:$0xff]
        %v493 = vld [vmem:[#allocation2 + $0x20] sm:$0xff]
        %v494 = vld [vmem:[#allocation2 + $0x28] sm:$0xff]
        %501 = vrot.lane.b32.xlu0 %v489, 110
        %v502 = vpop.permute.xlu0 %501
        %503 = vrot.lane.b32.xlu0 %v490, 110
        %v504 = vpop.permute.xlu0 %503
        %505 = vrot.lane.b32.xlu0 %v491, 110
        %v506 = vpop.permute.xlu0 %505
        %507 = vrot.lane.b32.xlu0 %v492, 110
        %v508 = vpop.permute.xlu0 %507
        %509 = vrot.lane.b32.xlu0 %v493, 110
        %v510 = vpop.permute.xlu0 %509
        %511 = vrot.lane.b32.xlu0 %v494, 110
        %v512 = vpop.permute.xlu0 %511
        %vm513 = vcmask 900096
        %v514 = vsel %vm513, %v502, %v504
        %v515 = vsel %vm513, %v504, %v506
        %v516 = vsel %vm513, %v508, %v510
        %v517 = vsel %vm513, %v510, %v512
        %v522 = vsel %vm252, %v514, 0.0
        %v523 = vsel %vm253, %v515, 0.0
        %v524 = vsel %vm252, %v516, 0.0
        %v525 = vsel %vm253, %v517, 0.0
        %526 = vst [vmem:[#allocation3 + $0xa0] sm:$0xff] %v522
        %527 = vst [vmem:[#allocation3 + $0xa8] sm:$0xff] %v523
        %528 = vst [vmem:[#allocation3 + $0xb0] sm:$0xff] %v524
        %529 = vst [vmem:[#allocation3 + $0xb8] sm:$0xff] %v525
        %v530 = vld [vmem:[#allocation2] sm:$0xff]
        %v531 = vld [vmem:[#allocation2 + $0x8] sm:$0xff]
        %v532 = vld [vmem:[#allocation2 + $0x10] sm:$0xff]
        %v533 = vld [vmem:[#allocation2 + $0x18] sm:$0xff]
        %v534 = vld [vmem:[#allocation2 + $0x20] sm:$0xff]
        %v535 = vld [vmem:[#allocation2 + $0x28] sm:$0xff]
        %542 = vrot.lane.b32.xlu0 %v530, 96
        %v543 = vpop.permute.xlu0 %542
        %544 = vrot.lane.b32.xlu0 %v531, 96
        %v545 = vpop.permute.xlu0 %544
        %546 = vrot.lane.b32.xlu0 %v532, 96
        %v547 = vpop.permute.xlu0 %546
        %548 = vrot.lane.b32.xlu0 %v533, 96
        %v549 = vpop.permute.xlu0 %548
        %550 = vrot.lane.b32.xlu0 %v534, 96
        %v551 = vpop.permute.xlu0 %550
        %552 = vrot.lane.b32.xlu0 %v535, 96
        %v553 = vpop.permute.xlu0 %552
        %vm554 = vcmask 785408
        %v555 = vsel %vm554, %v543, %v545
        %v556 = vsel %vm554, %v545, %v547
        %v557 = vsel %vm554, %v549, %v551
        %v558 = vsel %vm554, %v551, %v553
        %v563 = vsel %vm246, %v555, 0.0
        %v564 = vsel %vm247, %v556, 0.0
        %v565 = vsel %vm246, %v557, 0.0
        %v566 = vsel %vm247, %v558, 0.0
        %567 = vst [vmem:[#allocation3 + $0xc0] sm:$0xff] %v563
        %568 = vst [vmem:[#allocation3 + $0xc8] sm:$0xff] %v564
        %569 = vst [vmem:[#allocation3 + $0xd0] sm:$0xff] %v565
        %570 = vst [vmem:[#allocation3 + $0xd8] sm:$0xff] %v566
        %v571 = vld [vmem:[#allocation2] sm:$0xff]
        %v572 = vld [vmem:[#allocation2 + $0x8] sm:$0xff]
        %v573 = vld [vmem:[#allocation2 + $0x10] sm:$0xff]
        %v574 = vld [vmem:[#allocation2 + $0x18] sm:$0xff]
        %v575 = vld [vmem:[#allocation2 + $0x20] sm:$0xff]
        %v576 = vld [vmem:[#allocation2 + $0x28] sm:$0xff]
        %583 = vrot.lane.b32.xlu0 %v571, 95
        %v584 = vpop.permute.xlu0 %583
        %585 = vrot.lane.b32.xlu0 %v572, 95
        %v586 = vpop.permute.xlu0 %585
        %587 = vrot.lane.b32.xlu0 %v573, 95
        %v588 = vpop.permute.xlu0 %587
        %589 = vrot.lane.b32.xlu0 %v574, 95
        %v590 = vpop.permute.xlu0 %589
        %591 = vrot.lane.b32.xlu0 %v575, 95
        %v592 = vpop.permute.xlu0 %591
        %593 = vrot.lane.b32.xlu0 %v576, 95
        %v594 = vpop.permute.xlu0 %593
        %vm595 = vcmask 777216
        %v596 = vsel %vm595, %v584, %v586
        %v597 = vsel %vm595, %v586, %v588
        %v598 = vsel %vm595, %v590, %v592
        %v599 = vsel %vm595, %v592, %v594
        %604 = vst [vmem:[#allocation3 + $0xe0] sm:$0xff] %v596
        %605 = vst [vmem:[#allocation3 + $0xe8] sm:$0xff] %v597
        %606 = vst [vmem:[#allocation3 + $0xf0] sm:$0xff] %v598
        %607 = vst [vmem:[#allocation3 + $0xf8] sm:$0xff] %v599
        %v608 = vld [vmem:[#allocation2] sm:$0xff]
        %v609 = vld [vmem:[#allocation2 + $0x8] sm:$0xff]
        %v610 = vld [vmem:[#allocation2 + $0x10] sm:$0xff]
        %v611 = vld [vmem:[#allocation2 + $0x18] sm:$0xff]
        %v612 = vld [vmem:[#allocation2 + $0x20] sm:$0xff]
        %v613 = vld [vmem:[#allocation2 + $0x28] sm:$0xff]
        %620 = vrot.lane.b32.xlu0 %v608, 94
        %v621 = vpop.permute.xlu0 %620
        %622 = vrot.lane.b32.xlu0 %v609, 94
        %v623 = vpop.permute.xlu0 %622
        %624 = vrot.lane.b32.xlu0 %v610, 94
        %v625 = vpop.permute.xlu0 %624
        %626 = vrot.lane.b32.xlu0 %v611, 94
        %v627 = vpop.permute.xlu0 %626
        %628 = vrot.lane.b32.xlu0 %v612, 94
        %v629 = vpop.permute.xlu0 %628
        %630 = vrot.lane.b32.xlu0 %v613, 94
        %v631 = vpop.permute.xlu0 %630
        %vm632 = vcmask 769024
        %v633 = vsel %vm632, %v621, %v623
        %v634 = vsel %vm632, %v623, %v625
        %v635 = vsel %vm632, %v627, %v629
        %v636 = vsel %vm632, %v629, %v631
        %v641 = vsel %vm252, %v633, 0.0
        %v642 = vsel %vm253, %v634, 0.0
        %v643 = vsel %vm252, %v635, 0.0
        %v644 = vsel %vm253, %v636, 0.0
        %645 = vst [vmem:[#allocation3 + $0x100] sm:$0xff] %v641
        %646 = vst [vmem:[#allocation3 + $0x108] sm:$0xff] %v642
        %647 = vst [vmem:[#allocation3 + $0x110] sm:$0xff] %v643
        %648 = vst [vmem:[#allocation3 + $0x118] sm:$0xff] %v644
        %v649 = vld [vmem:[%s3] sm:$0xff]
        %v650 = vld [vmem:[#allocation3] sm:$0xff]
        %v651 = vld [vmem:[#allocation3 + $0x8] sm:$0xff]
        %v652 = vld [vmem:[#allocation3 + $0x10] sm:$0xff]
        %v653 = vld [vmem:[#allocation3 + $0x18] sm:$0xff]
        %v654 = vld [vmem:[#allocation3 + $0x20] sm:$0xff]
        %v655 = vld [vmem:[#allocation3 + $0x28] sm:$0xff]
        %v656 = vld [vmem:[#allocation3 + $0x30] sm:$0xff]
        %v657 = vld [vmem:[#allocation3 + $0x38] sm:$0xff]
        %v658 = vld [vmem:[#allocation3 + $0x40] sm:$0xff]
        %v659 = vld [vmem:[#allocation3 + $0x48] sm:$0xff]
        %v660 = vld [vmem:[#allocation3 + $0x50] sm:$0xff]
        %v661 = vld [vmem:[#allocation3 + $0x58] sm:$0xff]
        %v662 = vld [vmem:[#allocation3 + $0x60] sm:$0xff]
        %v663 = vld [vmem:[#allocation3 + $0x68] sm:$0xff]
        %v664 = vld [vmem:[#allocation3 + $0x70] sm:$0xff]
        %v665 = vld [vmem:[#allocation3 + $0x78] sm:$0xff]
        %v666 = vld [vmem:[#allocation3 + $0x80] sm:$0xff]
        %v667 = vld [vmem:[#allocation3 + $0x88] sm:$0xff]
        %v668 = vld [vmem:[#allocation3 + $0x90] sm:$0xff]
        %v669 = vld [vmem:[#allocation3 + $0x98] sm:$0xff]
        %v670 = vld [vmem:[#allocation3 + $0xa0] sm:$0xff]
        %v671 = vld [vmem:[#allocation3 + $0xa8] sm:$0xff]
        %v672 = vld [vmem:[#allocation3 + $0xb0] sm:$0xff]
        %v673 = vld [vmem:[#allocation3 + $0xb8] sm:$0xff]
        %v674 = vld [vmem:[#allocation3 + $0xc0] sm:$0xff]
        %v675 = vld [vmem:[#allocation3 + $0xc8] sm:$0xff]
        %v676 = vld [vmem:[#allocation3 + $0xd0] sm:$0xff]
        %v677 = vld [vmem:[#allocation3 + $0xd8] sm:$0xff]
        %v678 = vld [vmem:[#allocation3 + $0xe0] sm:$0xff]
        %v679 = vld [vmem:[#allocation3 + $0xe8] sm:$0xff]
        %v680 = vld [vmem:[#allocation3 + $0xf0] sm:$0xff]
        %v681 = vld [vmem:[#allocation3 + $0xf8] sm:$0xff]
        %v682 = vld [vmem:[#allocation3 + $0x100] sm:$0xff]
        %v683 = vld [vmem:[#allocation3 + $0x108] sm:$0xff]
        %v684 = vld [vmem:[#allocation3 + $0x110] sm:$0xff]
        %v685 = vld [vmem:[#allocation3 + $0x118] sm:$0xff]
        %687 = vst [vmem:[#allocation1] ss:$2 sm:$0xff] %v649
        %v688 = vld.sshfl [vmem:[#allocation1] sm:$0xff pattern:$0x75316420]
        %v689 = vld.sshfl [vmem:[#allocation1 + $0x8] sm:$0xff pattern:$0x75316420]
        %vm691 = vcmask 130048
        %v692 = vsel %vm691, %v689, 0
        %694 = vmatpush.msra.mxu0 %v680
        %695 = vmatpush.msra.mxu0 %v678
        %696 = vmatpush.msra.mxu0 %v676
        %697 = vmatpush.msra.mxu0 %v674
        %698 = vmatpush.msra.mxu0 %v672
        %699 = vmatpush.msra.mxu0 %v670
        %700 = vmatpush.msra.mxu0 %v668
        %701 = vmatpush.msra.mxu0 %v666
        %702 = vmatpush.msra.mxu0 %v664
        %703 = vmatpush.msra.mxu0 %v662
        %704 = vmatpush.msra.mxu0 %v660
        %705 = vmatpush.msra.mxu0 %v658
        %706 = vmatpush.msra.mxu0 %v656
        %707 = vmatpush.msra.mxu0 %v654
        %708 = vmatpush.msra.mxu0 %v652
        %709 = vmatpush.msra.mxu0 %v650
        %710 = vmatmul.f32.gmra.mxu0 %v688
        %v711 = vpop.f32.mrf.mxu0
        %v712 = vadd.f32 0.0, %v711
        %713 = vdwg.mxu0
        %714 = vmatpush.msra.mxu0 0.0
        %715 = vmatpush.msra.mxu0 0.0
        %716 = vmatpush.msra.mxu0 0.0
        %717 = vmatpush.msra.mxu0 0.0
        %718 = vmatpush.msra.mxu0 0.0
        %719 = vmatpush.msra.mxu0 0.0
        %720 = vmatpush.msra.mxu0 0.0
        %721 = vmatpush.msra.mxu0 0.0
        %722 = vmatpush.msra.mxu0 0.0
        %723 = vmatpush.msra.mxu0 0.0
        %724 = vmatpush.msra.mxu0 0.0
        %725 = vmatpush.msra.mxu0 0.0
        %726 = vmatpush.msra.mxu0 0.0
        %727 = vmatpush.msra.mxu0 0.0
        %728 = vmatpush.msra.mxu0 %v684
        %729 = vmatpush.msra.mxu0 %v682
        %730 = vmatmul.f32.gmra.mxu0 %v692
        %v731 = vpop.f32.mrf.mxu0
        %v732 = vadd.f32 %v712, %v731
        %733 = vdwg.mxu0
        %734 = vmatpush.msra.mxu0 %v681
        %735 = vmatpush.msra.mxu0 %v679
        %736 = vmatpush.msra.mxu0 %v677
        %737 = vmatpush.msra.mxu0 %v675
        %738 = vmatpush.msra.mxu0 %v673
        %739 = vmatpush.msra.mxu0 %v671
        %740 = vmatpush.msra.mxu0 %v669
        %741 = vmatpush.msra.mxu0 %v667
        %742 = vmatpush.msra.mxu0 %v665
        %743 = vmatpush.msra.mxu0 %v663
        %744 = vmatpush.msra.mxu0 %v661
        %745 = vmatpush.msra.mxu0 %v659
        %746 = vmatpush.msra.mxu0 %v657
        %747 = vmatpush.msra.mxu0 %v655
        %748 = vmatpush.msra.mxu0 %v653
        %749 = vmatpush.msra.mxu0 %v651
        %750 = vmatmul.f32.gmra.mxu0 %v688
        %v751 = vpop.f32.mrf.mxu0
        %v752 = vadd.f32 0.0, %v751
        %753 = vdwg.mxu0
        %754 = vmatpush.msra.mxu0 0.0
        %755 = vmatpush.msra.mxu0 0.0
        %756 = vmatpush.msra.mxu0 0.0
        %757 = vmatpush.msra.mxu0 0.0
        %758 = vmatpush.msra.mxu0 0.0
        %759 = vmatpush.msra.mxu0 0.0
        %760 = vmatpush.msra.mxu0 0.0
        %761 = vmatpush.msra.mxu0 0.0
        %762 = vmatpush.msra.mxu0 0.0
        %763 = vmatpush.msra.mxu0 0.0
        %764 = vmatpush.msra.mxu0 0.0
        %765 = vmatpush.msra.mxu0 0.0
        %766 = vmatpush.msra.mxu0 0.0
        %767 = vmatpush.msra.mxu0 0.0
        %768 = vmatpush.msra.mxu0 %v685
        %769 = vmatpush.msra.mxu0 %v683
        %770 = vmatmul.f32.gmra.mxu0 %v692
        %v771 = vpop.f32.mrf.mxu0
        %v772 = vadd.f32 %v752, %v771
        %773 = vdwg.mxu0
        %v776 = vrot.slane %v732, 4
        %v777 = vrot.slane %v772, 4
        %780 = vst [vmem:[%s190] sm:$0xf0] %v776
        %781 = vst [vmem:[%s190 + $0x8] sm:$0xf0] %v777
        %v782 = vld [vmem:[%s190] sm:$0xff]
        %v783 = vld [vmem:[%s190 + $0x8] sm:$0xff]
        %v784 = vld [vmem:[%s190 + $0x10] sm:$0xff]
        %v785 = vld [vmem:[%s190 + $0x18] sm:$0xff]
        %s786 = scalar_lea.vmem %s1, 16
        %v787 = vld [vmem:[%s786] sm:$0xff]
        %v788 = vld [vmem:[%s786 + $0x8] sm:$0xff]
        %790 = vset.pattern.permute.xlu0 0
        %791 = vperm.xlu0 %790, %v787
        %v792 = vpop.permute.xlu0 %791
        %795 = vset.pattern.permute.xlu0 0
        %796 = vperm.xlu0 %795, %v788
        %v797 = vpop.permute.xlu0 %796
        %v799 = vmul.f32 %v782, %v792
        %v800 = vmul.f32 %v783, %v792
        %v801 = vmul.f32 %v784, %v797
        %v802 = vmul.f32 %v785, %v797
        %s803 = scalar_lea.vmem %s2, 16
        %v804 = vld [vmem:[%s803] sm:$0xff]
        %v805 = vld [vmem:[%s803 + $0x8] sm:$0xff]
        %807 = vset.pattern.permute.xlu0 0
        %808 = vperm.xlu0 %807, %v804
        %v809 = vpop.permute.xlu0 %808
        %812 = vset.pattern.permute.xlu0 0
        %813 = vperm.xlu0 %812, %v805
        %v814 = vpop.permute.xlu0 %813
        %v816 = vadd.f32 %v799, %v809
        %v817 = vadd.f32 %v800, %v809
        %v818 = vadd.f32 %v801, %v814
        %v819 = vadd.f32 %v802, %v814
        %v820 = vmax.f32 %v816, 0.0
        %v821 = vmax.f32 %v817, 0.0
        %v822 = vmax.f32 %v818, 0.0
        %v823 = vmax.f32 %v819, 0.0
        %828 = vrot.lane.b32.xlu0 %v820, 17
        %v829 = vpop.permute.xlu0 %828
        %830 = vrot.lane.b32.xlu0 %v821, 17
        %v831 = vpop.permute.xlu0 %830
        %832 = vrot.lane.b32.xlu0 %v822, 17
        %v833 = vpop.permute.xlu0 %832
        %834 = vrot.lane.b32.xlu0 %v823, 17
        %v835 = vpop.permute.xlu0 %834
        %v836 = vsel %vm209, %v829, %v831
        %v837 = vsel %vm209, %v833, %v835
        %844 = vst.msk [vmem:[#allocation2] sm:$0xff] %vm314, %v829
        %845 = vst [vmem:[#allocation2 + $0x8] sm:$0xff] %v836
        %846 = vst.msk [vmem:[#allocation2 + $0x10] sm:$0xff] %vm209, %v831
        %847 = vst.msk [vmem:[#allocation2 + $0x18] sm:$0xff] %vm314, %v833
        %848 = vst [vmem:[#allocation2 + $0x20] sm:$0xff] %v837
        %849 = vst.msk [vmem:[#allocation2 + $0x28] sm:$0xff] %vm209, %v835
        %v850 = vld [vmem:[#allocation2] sm:$0xff]
        %v851 = vld [vmem:[#allocation2 + $0x8] sm:$0xff]
        %v852 = vld [vmem:[#allocation2 + $0x18] sm:$0xff]
        %v853 = vld [vmem:[#allocation2 + $0x20] sm:$0xff]
        %v854 = vsel %vm246, %v850, 0.0
        %v855 = vsel %vm247, %v851, 0.0
        %v856 = vsel %vm246, %v852, 0.0
        %v857 = vsel %vm247, %v853, 0.0
        %858 = vst [vmem:[#allocation3] sm:$0xff] %v854
        %859 = vst [vmem:[#allocation3 + $0x8] sm:$0xff] %v855
        %860 = vst [vmem:[#allocation3 + $0x10] sm:$0xff] %v856
        %861 = vst [vmem:[#allocation3 + $0x18] sm:$0xff] %v857
        %v862 = vld [vmem:[#allocation2] sm:$0xff]
        %v863 = vld [vmem:[#allocation2 + $0x8] sm:$0xff]
        %v864 = vld [vmem:[#allocation2 + $0x10] sm:$0xff]
        %v865 = vld [vmem:[#allocation2 + $0x18] sm:$0xff]
        %v866 = vld [vmem:[#allocation2 + $0x20] sm:$0xff]
        %v867 = vld [vmem:[#allocation2 + $0x28] sm:$0xff]
        %874 = vrot.lane.b32.xlu0 %v862, 127
        %v875 = vpop.permute.xlu0 %874
        %876 = vrot.lane.b32.xlu0 %v863, 127
        %v877 = vpop.permute.xlu0 %876
        %878 = vrot.lane.b32.xlu0 %v864, 127
        %v879 = vpop.permute.xlu0 %878
        %880 = vrot.lane.b32.xlu0 %v865, 127
        %v881 = vpop.permute.xlu0 %880
        %882 = vrot.lane.b32.xlu0 %v866, 127
        %v883 = vpop.permute.xlu0 %882
        %884 = vrot.lane.b32.xlu0 %v867, 127
        %v885 = vpop.permute.xlu0 %884
        %v886 = vsel %vm357, %v875, %v877
        %v887 = vsel %vm357, %v877, %v879
        %v888 = vsel %vm357, %v881, %v883
        %v889 = vsel %vm357, %v883, %v885
        %894 = vst [vmem:[#allocation3 + $0x20] sm:$0xff] %v886
        %895 = vst [vmem:[#allocation3 + $0x28] sm:$0xff] %v887
        %896 = vst [vmem:[#allocation3 + $0x30] sm:$0xff] %v888
        %897 = vst [vmem:[#allocation3 + $0x38] sm:$0xff] %v889
        %v898 = vld [vmem:[#allocation2] sm:$0xff]
        %v899 = vld [vmem:[#allocation2 + $0x8] sm:$0xff]
        %v900 = vld [vmem:[#allocation2 + $0x10] sm:$0xff]
        %v901 = vld [vmem:[#allocation2 + $0x18] sm:$0xff]
        %v902 = vld [vmem:[#allocation2 + $0x20] sm:$0xff]
        %v903 = vld [vmem:[#allocation2 + $0x28] sm:$0xff]
        %910 = vrot.lane.b32.xlu0 %v898, 126
        %v911 = vpop.permute.xlu0 %910
        %912 = vrot.lane.b32.xlu0 %v899, 126
        %v913 = vpop.permute.xlu0 %912
        %914 = vrot.lane.b32.xlu0 %v900, 126
        %v915 = vpop.permute.xlu0 %914
        %916 = vrot.lane.b32.xlu0 %v901, 126
        %v917 = vpop.permute.xlu0 %916
        %918 = vrot.lane.b32.xlu0 %v902, 126
        %v919 = vpop.permute.xlu0 %918
        %920 = vrot.lane.b32.xlu0 %v903, 126
        %v921 = vpop.permute.xlu0 %920
        %v922 = vsel %vm394, %v911, %v913
        %v923 = vsel %vm394, %v913, %v915
        %v924 = vsel %vm394, %v917, %v919
        %v925 = vsel %vm394, %v919, %v921
        %v930 = vsel %vm252, %v922, 0.0
        %v931 = vsel %vm253, %v923, 0.0
        %v932 = vsel %vm252, %v924, 0.0
        %v933 = vsel %vm253, %v925, 0.0
        %934 = vst [vmem:[#allocation3 + $0x40] sm:$0xff] %v930
        %935 = vst [vmem:[#allocation3 + $0x48] sm:$0xff] %v931
        %936 = vst [vmem:[#allocation3 + $0x50] sm:$0xff] %v932
        %937 = vst [vmem:[#allocation3 + $0x58] sm:$0xff] %v933
        %v938 = vld [vmem:[#allocation2] sm:$0xff]
        %v939 = vld [vmem:[#allocation2 + $0x8] sm:$0xff]
        %v940 = vld [vmem:[#allocation2 + $0x10] sm:$0xff]
        %v941 = vld [vmem:[#allocation2 + $0x18] sm:$0xff]
        %v942 = vld [vmem:[#allocation2 + $0x20] sm:$0xff]
        %v943 = vld [vmem:[#allocation2 + $0x28] sm:$0xff]
        %950 = vrot.lane.b32.xlu0 %v938, 112
        %v951 = vpop.permute.xlu0 %950
        %952 = vrot.lane.b32.xlu0 %v939, 112
        %v953 = vpop.permute.xlu0 %952
        %954 = vrot.lane.b32.xlu0 %v940, 112
        %v955 = vpop.permute.xlu0 %954
        %956 = vrot.lane.b32.xlu0 %v941, 112
        %v957 = vpop.permute.xlu0 %956
        %958 = vrot.lane.b32.xlu0 %v942, 112
        %v959 = vpop.permute.xlu0 %958
        %960 = vrot.lane.b32.xlu0 %v943, 112
        %v961 = vpop.permute.xlu0 %960
        %v962 = vsel %vm435, %v951, %v953
        %v963 = vsel %vm435, %v953, %v955
        %v964 = vsel %vm435, %v957, %v959
        %v965 = vsel %vm435, %v959, %v961
        %v970 = vsel %vm246, %v962, 0.0
        %v971 = vsel %vm247, %v963, 0.0
        %v972 = vsel %vm246, %v964, 0.0
        %v973 = vsel %vm247, %v965, 0.0
        %974 = vst [vmem:[#allocation3 + $0x60] sm:$0xff] %v970
        %975 = vst [vmem:[#allocation3 + $0x68] sm:$0xff] %v971
        %976 = vst [vmem:[#allocation3 + $0x70] sm:$0xff] %v972
        %977 = vst [vmem:[#allocation3 + $0x78] sm:$0xff] %v973
        %v978 = vld [vmem:[#allocation2] sm:$0xff]
        %v979 = vld [vmem:[#allocation2 + $0x8] sm:$0xff]
        %v980 = vld [vmem:[#allocation2 + $0x10] sm:$0xff]
        %v981 = vld [vmem:[#allocation2 + $0x18] sm:$0xff]
        %v982 = vld [vmem:[#allocation2 + $0x20] sm:$0xff]
        %v983 = vld [vmem:[#allocation2 + $0x28] sm:$0xff]
        %990 = vrot.lane.b32.xlu0 %v978, 111
        %v991 = vpop.permute.xlu0 %990
        %992 = vrot.lane.b32.xlu0 %v979, 111
        %v993 = vpop.permute.xlu0 %992
        %994 = vrot.lane.b32.xlu0 %v980, 111
        %v995 = vpop.permute.xlu0 %994
        %996 = vrot.lane.b32.xlu0 %v981, 111
        %v997 = vpop.permute.xlu0 %996
        %998 = vrot.lane.b32.xlu0 %v982, 111
        %v999 = vpop.permute.xlu0 %998
        %1000 = vrot.lane.b32.xlu0 %v983, 111
        %v1001 = vpop.permute.xlu0 %1000
        %v1002 = vsel %vm476, %v991, %v993
        %v1003 = vsel %vm476, %v993, %v995
        %v1004 = vsel %vm476, %v997, %v999
        %v1005 = vsel %vm476, %v999, %v1001
        %1010 = vst [vmem:[#allocation3 + $0x80] sm:$0xff] %v1002
        %1011 = vst [vmem:[#allocation3 + $0x88] sm:$0xff] %v1003
        %1012 = vst [vmem:[#allocation3 + $0x90] sm:$0xff] %v1004
        %1013 = vst [vmem:[#allocation3 + $0x98] sm:$0xff] %v1005
        %v1014 = vld [vmem:[#allocation2] sm:$0xff]
        %v1015 = vld [vmem:[#allocation2 + $0x8] sm:$0xff]
        %v1016 = vld [vmem:[#allocation2 + $0x10] sm:$0xff]
        %v1017 = vld [vmem:[#allocation2 + $0x18] sm:$0xff]
        %v1018 = vld [vmem:[#allocation2 + $0x20] sm:$0xff]
        %v1019 = vld [vmem:[#allocation2 + $0x28] sm:$0xff]
        %1026 = vrot.lane.b32.xlu0 %v1014, 110
        %v1027 = vpop.permute.xlu0 %1026
        %1028 = vrot.lane.b32.xlu0 %v1015, 110
        %v1029 = vpop.permute.xlu0 %1028
        %1030 = vrot.lane.b32.xlu0 %v1016, 110
        %v1031 = vpop.permute.xlu0 %1030
        %1032 = vrot.lane.b32.xlu0 %v1017, 110
        %v1033 = vpop.permute.xlu0 %1032
        %1034 = vrot.lane.b32.xlu0 %v1018, 110
        %v1035 = vpop.permute.xlu0 %1034
        %1036 = vrot.lane.b32.xlu0 %v1019, 110
        %v1037 = vpop.permute.xlu0 %1036
        %v1038 = vsel %vm513, %v1027, %v1029
        %v1039 = vsel %vm513, %v1029, %v1031
        %v1040 = vsel %vm513, %v1033, %v1035
        %v1041 = vsel %vm513, %v1035, %v1037
        %v1046 = vsel %vm252, %v1038, 0.0
        %v1047 = vsel %vm253, %v1039, 0.0
        %v1048 = vsel %vm252, %v1040, 0.0
        %v1049 = vsel %vm253, %v1041, 0.0
        %1050 = vst [vmem:[#allocation3 + $0xa0] sm:$0xff] %v1046
        %1051 = vst [vmem:[#allocation3 + $0xa8] sm:$0xff] %v1047
        %1052 = vst [vmem:[#allocation3 + $0xb0] sm:$0xff] %v1048
        %1053 = vst [vmem:[#allocation3 + $0xb8] sm:$0xff] %v1049
        %v1054 = vld [vmem:[#allocation2] sm:$0xff]
        %v1055 = vld [vmem:[#allocation2 + $0x8] sm:$0xff]
        %v1056 = vld [vmem:[#allocation2 + $0x10] sm:$0xff]
        %v1057 = vld [vmem:[#allocation2 + $0x18] sm:$0xff]
        %v1058 = vld [vmem:[#allocation2 + $0x20] sm:$0xff]
        %v1059 = vld [vmem:[#allocation2 + $0x28] sm:$0xff]
        %1066 = vrot.lane.b32.xlu0 %v1054, 96
        %v1067 = vpop.permute.xlu0 %1066
        %1068 = vrot.lane.b32.xlu0 %v1055, 96
        %v1069 = vpop.permute.xlu0 %1068
        %1070 = vrot.lane.b32.xlu0 %v1056, 96
        %v1071 = vpop.permute.xlu0 %1070
        %1072 = vrot.lane.b32.xlu0 %v1057, 96
        %v1073 = vpop.permute.xlu0 %1072
        %1074 = vrot.lane.b32.xlu0 %v1058, 96
        %v1075 = vpop.permute.xlu0 %1074
        %1076 = vrot.lane.b32.xlu0 %v1059, 96
        %v1077 = vpop.permute.xlu0 %1076
        %v1078 = vsel %vm554, %v1067, %v1069
        %v1079 = vsel %vm554, %v1069, %v1071
        %v1080 = vsel %vm554, %v1073, %v1075
        %v1081 = vsel %vm554, %v1075, %v1077
        %v1086 = vsel %vm246, %v1078, 0.0
        %v1087 = vsel %vm247, %v1079, 0.0
        %v1088 = vsel %vm246, %v1080, 0.0
        %v1089 = vsel %vm247, %v1081, 0.0
        %1090 = vst [vmem:[#allocation3 + $0xc0] sm:$0xff] %v1086
        %1091 = vst [vmem:[#allocation3 + $0xc8] sm:$0xff] %v1087
        %1092 = vst [vmem:[#allocation3 + $0xd0] sm:$0xff] %v1088
        %1093 = vst [vmem:[#allocation3 + $0xd8] sm:$0xff] %v1089
        %v1094 = vld [vmem:[#allocation2] sm:$0xff]
        %v1095 = vld [vmem:[#allocation2 + $0x8] sm:$0xff]
        %v1096 = vld [vmem:[#allocation2 + $0x10] sm:$0xff]
        %v1097 = vld [vmem:[#allocation2 + $0x18] sm:$0xff]
        %v1098 = vld [vmem:[#allocation2 + $0x20] sm:$0xff]
        %v1099 = vld [vmem:[#allocation2 + $0x28] sm:$0xff]
        %1106 = vrot.lane.b32.xlu0 %v1094, 95
        %v1107 = vpop.permute.xlu0 %1106
        %1108 = vrot.lane.b32.xlu0 %v1095, 95
        %v1109 = vpop.permute.xlu0 %1108
        %1110 = vrot.lane.b32.xlu0 %v1096, 95
        %v1111 = vpop.permute.xlu0 %1110
        %1112 = vrot.lane.b32.xlu0 %v1097, 95
        %v1113 = vpop.permute.xlu0 %1112
        %1114 = vrot.lane.b32.xlu0 %v1098, 95
        %v1115 = vpop.permute.xlu0 %1114
        %1116 = vrot.lane.b32.xlu0 %v1099, 95
        %v1117 = vpop.permute.xlu0 %1116
        %v1118 = vsel %vm595, %v1107, %v1109
        %v1119 = vsel %vm595, %v1109, %v1111
        %v1120 = vsel %vm595, %v1113, %v1115
        %v1121 = vsel %vm595, %v1115, %v1117
        %1126 = vst [vmem:[#allocation3 + $0xe0] sm:$0xff] %v1118
        %1127 = vst [vmem:[#allocation3 + $0xe8] sm:$0xff] %v1119
        %1128 = vst [vmem:[#allocation3 + $0xf0] sm:$0xff] %v1120
        %1129 = vst [vmem:[#allocation3 + $0xf8] sm:$0xff] %v1121
        %v1130 = vld [vmem:[#allocation2] sm:$0xff]
        %v1131 = vld [vmem:[#allocation2 + $0x8] sm:$0xff]
        %v1132 = vld [vmem:[#allocation2 + $0x10] sm:$0xff]
        %v1133 = vld [vmem:[#allocation2 + $0x18] sm:$0xff]
        %v1134 = vld [vmem:[#allocation2 + $0x20] sm:$0xff]
        %v1135 = vld [vmem:[#allocation2 + $0x28] sm:$0xff]
        %1142 = vrot.lane.b32.xlu0 %v1130, 94
        %v1143 = vpop.permute.xlu0 %1142
        %1144 = vrot.lane.b32.xlu0 %v1131, 94
        %v1145 = vpop.permute.xlu0 %1144
        %1146 = vrot.lane.b32.xlu0 %v1132, 94
        %v1147 = vpop.permute.xlu0 %1146
        %1148 = vrot.lane.b32.xlu0 %v1133, 94
        %v1149 = vpop.permute.xlu0 %1148
        %1150 = vrot.lane.b32.xlu0 %v1134, 94
        %v1151 = vpop.permute.xlu0 %1150
        %1152 = vrot.lane.b32.xlu0 %v1135, 94
        %v1153 = vpop.permute.xlu0 %1152
        %v1154 = vsel %vm632, %v1143, %v1145
        %v1155 = vsel %vm632, %v1145, %v1147
        %v1156 = vsel %vm632, %v1149, %v1151
        %v1157 = vsel %vm632, %v1151, %v1153
        %v1162 = vsel %vm252, %v1154, 0.0
        %v1163 = vsel %vm253, %v1155, 0.0
        %v1164 = vsel %vm252, %v1156, 0.0
        %v1165 = vsel %vm253, %v1157, 0.0
        %1166 = vst [vmem:[#allocation3 + $0x100] sm:$0xff] %v1162
        %1167 = vst [vmem:[#allocation3 + $0x108] sm:$0xff] %v1163
        %1168 = vst [vmem:[#allocation3 + $0x110] sm:$0xff] %v1164
        %1169 = vst [vmem:[#allocation3 + $0x118] sm:$0xff] %v1165
        %s1170 = scalar_lea.vmem %s3, 8
        %v1171 = vld [vmem:[%s1170] sm:$0xff]
        %v1172 = vld [vmem:[#allocation3] sm:$0xff]
        %v1173 = vld [vmem:[#allocation3 + $0x8] sm:$0xff]
        %v1174 = vld [vmem:[#allocation3 + $0x10] sm:$0xff]
        %v1175 = vld [vmem:[#allocation3 + $0x18] sm:$0xff]
        %v1176 = vld [vmem:[#allocation3 + $0x20] sm:$0xff]
        %v1177 = vld [vmem:[#allocation3 + $0x28] sm:$0xff]
        %v1178 = vld [vmem:[#allocation3 + $0x30] sm:$0xff]
        %v1179 = vld [vmem:[#allocation3 + $0x38] sm:$0xff]
        %v1180 = vld [vmem:[#allocation3 + $0x40] sm:$0xff]
        %v1181 = vld [vmem:[#allocation3 + $0x48] sm:$0xff]
        %v1182 = vld [vmem:[#allocation3 + $0x50] sm:$0xff]
        %v1183 = vld [vmem:[#allocation3 + $0x58] sm:$0xff]
        %v1184 = vld [vmem:[#allocation3 + $0x60] sm:$0xff]
        %v1185 = vld [vmem:[#allocation3 + $0x68] sm:$0xff]
        %v1186 = vld [vmem:[#allocation3 + $0x70] sm:$0xff]
        %v1187 = vld [vmem:[#allocation3 + $0x78] sm:$0xff]
        %v1188 = vld [vmem:[#allocation3 + $0x80] sm:$0xff]
        %v1189 = vld [vmem:[#allocation3 + $0x88] sm:$0xff]
        %v1190 = vld [vmem:[#allocation3 + $0x90] sm:$0xff]
        %v1191 = vld [vmem:[#allocation3 + $0x98] sm:$0xff]
        %v1192 = vld [vmem:[#allocation3 + $0xa0] sm:$0xff]
        %v1193 = vld [vmem:[#allocation3 + $0xa8] sm:$0xff]
        %v1194 = vld [vmem:[#allocation3 + $0xb0] sm:$0xff]
        %v1195 = vld [vmem:[#allocation3 + $0xb8] sm:$0xff]
        %v1196 = vld [vmem:[#allocation3 + $0xc0] sm:$0xff]
        %v1197 = vld [vmem:[#allocation3 + $0xc8] sm:$0xff]
        %v1198 = vld [vmem:[#allocation3 + $0xd0] sm:$0xff]
        %v1199 = vld [vmem:[#allocation3 + $0xd8] sm:$0xff]
        %v1200 = vld [vmem:[#allocation3 + $0xe0] sm:$0xff]
        %v1201 = vld [vmem:[#allocation3 + $0xe8] sm:$0xff]
        %v1202 = vld [vmem:[#allocation3 + $0xf0] sm:$0xff]
        %v1203 = vld [vmem:[#allocation3 + $0xf8] sm:$0xff]
        %v1204 = vld [vmem:[#allocation3 + $0x100] sm:$0xff]
        %v1205 = vld [vmem:[#allocation3 + $0x108] sm:$0xff]
        %v1206 = vld [vmem:[#allocation3 + $0x110] sm:$0xff]
        %v1207 = vld [vmem:[#allocation3 + $0x118] sm:$0xff]
        %1209 = vst [vmem:[#allocation1] ss:$2 sm:$0xff] %v1171
        %v1210 = vld.sshfl [vmem:[#allocation1] sm:$0xff pattern:$0x75316420]
        %v1211 = vld.sshfl [vmem:[#allocation1 + $0x8] sm:$0xff pattern:$0x75316420]
        %v1213 = vsel %vm691, %v1211, 0
        %1215 = vmatpush.msra.mxu0 %v1202
        %1216 = vmatpush.msra.mxu0 %v1200
        %1217 = vmatpush.msra.mxu0 %v1198
        %1218 = vmatpush.msra.mxu0 %v1196
        %1219 = vmatpush.msra.mxu0 %v1194
        %1220 = vmatpush.msra.mxu0 %v1192
        %1221 = vmatpush.msra.mxu0 %v1190
        %1222 = vmatpush.msra.mxu0 %v1188
        %1223 = vmatpush.msra.mxu0 %v1186
        %1224 = vmatpush.msra.mxu0 %v1184
        %1225 = vmatpush.msra.mxu0 %v1182
        %1226 = vmatpush.msra.mxu0 %v1180
        %1227 = vmatpush.msra.mxu0 %v1178
        %1228 = vmatpush.msra.mxu0 %v1176
        %1229 = vmatpush.msra.mxu0 %v1174
        %1230 = vmatpush.msra.mxu0 %v1172
        %1231 = vmatmul.f32.gmra.mxu0 %v1210
        %v1232 = vpop.f32.mrf.mxu0
        %v1233 = vadd.f32 0.0, %v1232
        %1234 = vdwg.mxu0
        %1235 = vmatpush.msra.mxu0 0.0
        %1236 = vmatpush.msra.mxu0 0.0
        %1237 = vmatpush.msra.mxu0 0.0
        %1238 = vmatpush.msra.mxu0 0.0
        %1239 = vmatpush.msra.mxu0 0.0
        %1240 = vmatpush.msra.mxu0 0.0
        %1241 = vmatpush.msra.mxu0 0.0
        %1242 = vmatpush.msra.mxu0 0.0
        %1243 = vmatpush.msra.mxu0 0.0
        %1244 = vmatpush.msra.mxu0 0.0
        %1245 = vmatpush.msra.mxu0 0.0
        %1246 = vmatpush.msra.mxu0 0.0
        %1247 = vmatpush.msra.mxu0 0.0
        %1248 = vmatpush.msra.mxu0 0.0
        %1249 = vmatpush.msra.mxu0 %v1206
        %1250 = vmatpush.msra.mxu0 %v1204
        %1251 = vmatmul.f32.gmra.mxu0 %v1213
        %v1252 = vpop.f32.mrf.mxu0
        %v1253 = vadd.f32 %v1233, %v1252
        %1254 = vdwg.mxu0
        %1255 = vmatpush.msra.mxu0 %v1203
        %1256 = vmatpush.msra.mxu0 %v1201
        %1257 = vmatpush.msra.mxu0 %v1199
        %1258 = vmatpush.msra.mxu0 %v1197
        %1259 = vmatpush.msra.mxu0 %v1195
        %1260 = vmatpush.msra.mxu0 %v1193
        %1261 = vmatpush.msra.mxu0 %v1191
        %1262 = vmatpush.msra.mxu0 %v1189
        %1263 = vmatpush.msra.mxu0 %v1187
        %1264 = vmatpush.msra.mxu0 %v1185
        %1265 = vmatpush.msra.mxu0 %v1183
        %1266 = vmatpush.msra.mxu0 %v1181
        %1267 = vmatpush.msra.mxu0 %v1179
        %1268 = vmatpush.msra.mxu0 %v1177
        %1269 = vmatpush.msra.mxu0 %v1175
        %1270 = vmatpush.msra.mxu0 %v1173
        %1271 = vmatmul.f32.gmra.mxu0 %v1210
        %v1272 = vpop.f32.mrf.mxu0
        %v1273 = vadd.f32 0.0, %v1272
        %1274 = vdwg.mxu0
        %1275 = vmatpush.msra.mxu0 0.0
        %1276 = vmatpush.msra.mxu0 0.0
        %1277 = vmatpush.msra.mxu0 0.0
        %1278 = vmatpush.msra.mxu0 0.0
        %1279 = vmatpush.msra.mxu0 0.0
        %1280 = vmatpush.msra.mxu0 0.0
        %1281 = vmatpush.msra.mxu0 0.0
        %1282 = vmatpush.msra.mxu0 0.0
        %1283 = vmatpush.msra.mxu0 0.0
        %1284 = vmatpush.msra.mxu0 0.0
        %1285 = vmatpush.msra.mxu0 0.0
        %1286 = vmatpush.msra.mxu0 0.0
        %1287 = vmatpush.msra.mxu0 0.0
        %1288 = vmatpush.msra.mxu0 0.0
        %1289 = vmatpush.msra.mxu0 %v1207
        %1290 = vmatpush.msra.mxu0 %v1205
        %1291 = vmatmul.f32.gmra.mxu0 %v1213
        %v1292 = vpop.f32.mrf.mxu0
        %v1293 = vadd.f32 %v1273, %v1292
        %1294 = vdwg.mxu0
        %1295 = vst [vmem:[%s190 + $0x10] sm:$0xf] %v1253
        %1296 = vst [vmem:[%s190 + $0x18] sm:$0xf] %v1293
        %v1297 = vld [vmem:[%s190] sm:$0xff]
        %v1298 = vld [vmem:[%s190 + $0x8] sm:$0xff]
        %v1299 = vld [vmem:[%s190 + $0x10] sm:$0xff]
        %v1300 = vld [vmem:[%s190 + $0x18] sm:$0xff]
        %s1301 = scalar_lea.vmem %s1, 32
        %v1302 = vld [vmem:[%s1301] sm:$0xff]
        %v1303 = vld [vmem:[%s1301 + $0x8] sm:$0xff]
        %1305 = vset.pattern.permute.xlu0 0
        %1306 = vperm.xlu0 %1305, %v1302
        %v1307 = vpop.permute.xlu0 %1306
        %1310 = vset.pattern.permute.xlu0 0
        %1311 = vperm.xlu0 %1310, %v1303
        %v1312 = vpop.permute.xlu0 %1311
        %v1314 = vmul.f32 %v1297, %v1307
        %v1315 = vmul.f32 %v1298, %v1307
        %v1316 = vmul.f32 %v1299, %v1312
        %v1317 = vmul.f32 %v1300, %v1312
        %s1318 = scalar_lea.vmem %s2, 32
        %v1319 = vld [vmem:[%s1318] sm:$0xff]
        %v1320 = vld [vmem:[%s1318 + $0x8] sm:$0xff]
        %1322 = vset.pattern.permute.xlu0 0
        %1323 = vperm.xlu0 %1322, %v1319
        %v1324 = vpop.permute.xlu0 %1323
        %1327 = vset.pattern.permute.xlu0 0
        %1328 = vperm.xlu0 %1327, %v1320
        %v1329 = vpop.permute.xlu0 %1328
        %v1331 = vadd.f32 %v1314, %v1324
        %v1332 = vadd.f32 %v1315, %v1324
        %v1333 = vadd.f32 %v1316, %v1329
        %v1334 = vadd.f32 %v1317, %v1329
        %v1335 = vmax.f32 %v1331, 0.0
        %v1336 = vmax.f32 %v1332, 0.0
        %v1337 = vmax.f32 %v1333, 0.0
        %v1338 = vmax.f32 %v1334, 0.0
        %1343 = vrot.lane.b32.xlu0 %v1335, 17
        %v1344 = vpop.permute.xlu0 %1343
        %1345 = vrot.lane.b32.xlu0 %v1336, 17
        %v1346 = vpop.permute.xlu0 %1345
        %1347 = vrot.lane.b32.xlu0 %v1337, 17
        %v1348 = vpop.permute.xlu0 %1347
        %1349 = vrot.lane.b32.xlu0 %v1338, 17
        %v1350 = vpop.permute.xlu0 %1349
        %v1351 = vsel %vm209, %v1344, %v1346
        %v1352 = vsel %vm209, %v1348, %v1350
        %1359 = vst.msk [vmem:[#allocation2] sm:$0xff] %vm314, %v1344
        %1360 = vst [vmem:[#allocation2 + $0x8] sm:$0xff] %v1351
        %1361 = vst.msk [vmem:[#allocation2 + $0x10] sm:$0xff] %vm209, %v1346
        %1362 = vst.msk [vmem:[#allocation2 + $0x18] sm:$0xff] %vm314, %v1348
        %1363 = vst [vmem:[#allocation2 + $0x20] sm:$0xff] %v1352
        %1364 = vst.msk [vmem:[#allocation2 + $0x28] sm:$0xff] %vm209, %v1350
        %v1365 = vld [vmem:[#allocation2] sm:$0xff]
        %v1366 = vld [vmem:[#allocation2 + $0x8] sm:$0xff]
        %v1367 = vld [vmem:[#allocation2 + $0x18] sm:$0xff]
        %v1368 = vld [vmem:[#allocation2 + $0x20] sm:$0xff]
        %v1369 = vsel %vm246, %v1365, 0.0
        %v1370 = vsel %vm247, %v1366, 0.0
        %v1371 = vsel %vm246, %v1367, 0.0
        %v1372 = vsel %vm247, %v1368, 0.0
        %1373 = vst [vmem:[#allocation3] sm:$0xff] %v1369
        %1374 = vst [vmem:[#allocation3 + $0x8] sm:$0xff] %v1370
        %1375 = vst [vmem:[#allocation3 + $0x10] sm:$0xff] %v1371
        %1376 = vst [vmem:[#allocation3 + $0x18] sm:$0xff] %v1372
        %v1377 = vld [vmem:[#allocation2] sm:$0xff]
        %v1378 = vld [vmem:[#allocation2 + $0x8] sm:$0xff]
        %v1379 = vld [vmem:[#allocation2 + $0x10] sm:$0xff]
        %v1380 = vld [vmem:[#allocation2 + $0x18] sm:$0xff]
        %v1381 = vld [vmem:[#allocation2 + $0x20] sm:$0xff]
        %v1382 = vld [vmem:[#allocation2 + $0x28] sm:$0xff]
        %1389 = vrot.lane.b32.xlu0 %v1377, 127
        %v1390 = vpop.permute.xlu0 %1389
        %1391 = vrot.lane.b32.xlu0 %v1378, 127
        %v1392 = vpop.permute.xlu0 %1391
        %1393 = vrot.lane.b32.xlu0 %v1379, 127
        %v1394 = vpop.permute.xlu0 %1393
        %1395 = vrot.lane.b32.xlu0 %v1380, 127
        %v1396 = vpop.permute.xlu0 %1395
        %1397 = vrot.lane.b32.xlu0 %v1381, 127
        %v1398 = vpop.permute.xlu0 %1397
        %1399 = vrot.lane.b32.xlu0 %v1382, 127
        %v1400 = vpop.permute.xlu0 %1399
        %v1401 = vsel %vm357, %v1390, %v1392
        %v1402 = vsel %vm357, %v1392, %v1394
        %v1403 = vsel %vm357, %v1396, %v1398
        %v1404 = vsel %vm357, %v1398, %v1400
        %1409 = vst [vmem:[#allocation3 + $0x20] sm:$0xff] %v1401
        %1410 = vst [vmem:[#allocation3 + $0x28] sm:$0xff] %v1402
        %1411 = vst [vmem:[#allocation3 + $0x30] sm:$0xff] %v1403
        %1412 = vst [vmem:[#allocation3 + $0x38] sm:$0xff] %v1404
        %v1413 = vld [vmem:[#allocation2] sm:$0xff]
        %v1414 = vld [vmem:[#allocation2 + $0x8] sm:$0xff]
        %v1415 = vld [vmem:[#allocation2 + $0x10] sm:$0xff]
        %v1416 = vld [vmem:[#allocation2 + $0x18] sm:$0xff]
        %v1417 = vld [vmem:[#allocation2 + $0x20] sm:$0xff]
        %v1418 = vld [vmem:[#allocation2 + $0x28] sm:$0xff]
        %1425 = vrot.lane.b32.xlu0 %v1413, 126
        %v1426 = vpop.permute.xlu0 %1425
        %1427 = vrot.lane.b32.xlu0 %v1414, 126
        %v1428 = vpop.permute.xlu0 %1427
        %1429 = vrot.lane.b32.xlu0 %v1415, 126
        %v1430 = vpop.permute.xlu0 %1429
        %1431 = vrot.lane.b32.xlu0 %v1416, 126
        %v1432 = vpop.permute.xlu0 %1431
        %1433 = vrot.lane.b32.xlu0 %v1417, 126
        %v1434 = vpop.permute.xlu0 %1433
        %1435 = vrot.lane.b32.xlu0 %v1418, 126
        %v1436 = vpop.permute.xlu0 %1435
        %v1437 = vsel %vm394, %v1426, %v1428
        %v1438 = vsel %vm394, %v1428, %v1430
        %v1439 = vsel %vm394, %v1432, %v1434
        %v1440 = vsel %vm394, %v1434, %v1436
        %v1445 = vsel %vm252, %v1437, 0.0
        %v1446 = vsel %vm253, %v1438, 0.0
        %v1447 = vsel %vm252, %v1439, 0.0
        %v1448 = vsel %vm253, %v1440, 0.0
        %1449 = vst [vmem:[#allocation3 + $0x40] sm:$0xff] %v1445
        %1450 = vst [vmem:[#allocation3 + $0x48] sm:$0xff] %v1446
        %1451 = vst [vmem:[#allocation3 + $0x50] sm:$0xff] %v1447
        %1452 = vst [vmem:[#allocation3 + $0x58] sm:$0xff] %v1448
        %v1453 = vld [vmem:[#allocation2] sm:$0xff]
        %v1454 = vld [vmem:[#allocation2 + $0x8] sm:$0xff]
        %v1455 = vld [vmem:[#allocation2 + $0x10] sm:$0xff]
        %v1456 = vld [vmem:[#allocation2 + $0x18] sm:$0xff]
        %v1457 = vld [vmem:[#allocation2 + $0x20] sm:$0xff]
        %v1458 = vld [vmem:[#allocation2 + $0x28] sm:$0xff]
        %1465 = vrot.lane.b32.xlu0 %v1453, 112
        %v1466 = vpop.permute.xlu0 %1465
        %1467 = vrot.lane.b32.xlu0 %v1454, 112
        %v1468 = vpop.permute.xlu0 %1467
        %1469 = vrot.lane.b32.xlu0 %v1455, 112
        %v1470 = vpop.permute.xlu0 %1469
        %1471 = vrot.lane.b32.xlu0 %v1456, 112
        %v1472 = vpop.permute.xlu0 %1471
        %1473 = vrot.lane.b32.xlu0 %v1457, 112
        %v1474 = vpop.permute.xlu0 %1473
        %1475 = vrot.lane.b32.xlu0 %v1458, 112
        %v1476 = vpop.permute.xlu0 %1475
        %v1477 = vsel %vm435, %v1466, %v1468
        %v1478 = vsel %vm435, %v1468, %v1470
        %v1479 = vsel %vm435, %v1472, %v1474
        %v1480 = vsel %vm435, %v1474, %v1476
        %v1485 = vsel %vm246, %v1477, 0.0
        %v1486 = vsel %vm247, %v1478, 0.0
        %v1487 = vsel %vm246, %v1479, 0.0
        %v1488 = vsel %vm247, %v1480, 0.0
        %1489 = vst [vmem:[#allocation3 + $0x60] sm:$0xff] %v1485
        %1490 = vst [vmem:[#allocation3 + $0x68] sm:$0xff] %v1486
        %1491 = vst [vmem:[#allocation3 + $0x70] sm:$0xff] %v1487
        %1492 = vst [vmem:[#allocation3 + $0x78] sm:$0xff] %v1488
        %v1493 = vld [vmem:[#allocation2] sm:$0xff]
        %v1494 = vld [vmem:[#allocation2 + $0x8] sm:$0xff]
        %v1495 = vld [vmem:[#allocation2 + $0x10] sm:$0xff]
        %v1496 = vld [vmem:[#allocation2 + $0x18] sm:$0xff]
        %v1497 = vld [vmem:[#allocation2 + $0x20] sm:$0xff]
        %v1498 = vld [vmem:[#allocation2 + $0x28] sm:$0xff]
        %1505 = vrot.lane.b32.xlu0 %v1493, 111
        %v1506 = vpop.permute.xlu0 %1505
        %1507 = vrot.lane.b32.xlu0 %v1494, 111
        %v1508 = vpop.permute.xlu0 %1507
        %1509 = vrot.lane.b32.xlu0 %v1495, 111
        %v1510 = vpop.permute.xlu0 %1509
        %1511 = vrot.lane.b32.xlu0 %v1496, 111
        %v1512 = vpop.permute.xlu0 %1511
        %1513 = vrot.lane.b32.xlu0 %v1497, 111
        %v1514 = vpop.permute.xlu0 %1513
        %1515 = vrot.lane.b32.xlu0 %v1498, 111
        %v1516 = vpop.permute.xlu0 %1515
        %v1517 = vsel %vm476, %v1506, %v1508
        %v1518 = vsel %vm476, %v1508, %v1510
        %v1519 = vsel %vm476, %v1512, %v1514
        %v1520 = vsel %vm476, %v1514, %v1516
        %1525 = vst [vmem:[#allocation3 + $0x80] sm:$0xff] %v1517
        %1526 = vst [vmem:[#allocation3 + $0x88] sm:$0xff] %v1518
        %1527 = vst [vmem:[#allocation3 + $0x90] sm:$0xff] %v1519
        %1528 = vst [vmem:[#allocation3 + $0x98] sm:$0xff] %v1520
        %v1529 = vld [vmem:[#allocation2] sm:$0xff]
        %v1530 = vld [vmem:[#allocation2 + $0x8] sm:$0xff]
        %v1531 = vld [vmem:[#allocation2 + $0x10] sm:$0xff]
        %v1532 = vld [vmem:[#allocation2 + $0x18] sm:$0xff]
        %v1533 = vld [vmem:[#allocation2 + $0x20] sm:$0xff]
        %v1534 = vld [vmem:[#allocation2 + $0x28] sm:$0xff]
        %1541 = vrot.lane.b32.xlu0 %v1529, 110
        %v1542 = vpop.permute.xlu0 %1541
        %1543 = vrot.lane.b32.xlu0 %v1530, 110
        %v1544 = vpop.permute.xlu0 %1543
        %1545 = vrot.lane.b32.xlu0 %v1531, 110
        %v1546 = vpop.permute.xlu0 %1545
        %1547 = vrot.lane.b32.xlu0 %v1532, 110
        %v1548 = vpop.permute.xlu0 %1547
        %1549 = vrot.lane.b32.xlu0 %v1533, 110
        %v1550 = vpop.permute.xlu0 %1549
        %1551 = vrot.lane.b32.xlu0 %v1534, 110
        %v1552 = vpop.permute.xlu0 %1551
        %v1553 = vsel %vm513, %v1542, %v1544
        %v1554 = vsel %vm513, %v1544, %v1546
        %v1555 = vsel %vm513, %v1548, %v1550
        %v1556 = vsel %vm513, %v1550, %v1552
        %v1561 = vsel %vm252, %v1553, 0.0
        %v1562 = vsel %vm253, %v1554, 0.0
        %v1563 = vsel %vm252, %v1555, 0.0
        %v1564 = vsel %vm253, %v1556, 0.0
        %1565 = vst [vmem:[#allocation3 + $0xa0] sm:$0xff] %v1561
        %1566 = vst [vmem:[#allocation3 + $0xa8] sm:$0xff] %v1562
        %1567 = vst [vmem:[#allocation3 + $0xb0] sm:$0xff] %v1563
        %1568 = vst [vmem:[#allocation3 + $0xb8] sm:$0xff] %v1564
        %v1569 = vld [vmem:[#allocation2] sm:$0xff]
        %v1570 = vld [vmem:[#allocation2 + $0x8] sm:$0xff]
        %v1571 = vld [vmem:[#allocation2 + $0x10] sm:$0xff]
        %v1572 = vld [vmem:[#allocation2 + $0x18] sm:$0xff]
        %v1573 = vld [vmem:[#allocation2 + $0x20] sm:$0xff]
        %v1574 = vld [vmem:[#allocation2 + $0x28] sm:$0xff]
        %1581 = vrot.lane.b32.xlu0 %v1569, 96
        %v1582 = vpop.permute.xlu0 %1581
        %1583 = vrot.lane.b32.xlu0 %v1570, 96
        %v1584 = vpop.permute.xlu0 %1583
        %1585 = vrot.lane.b32.xlu0 %v1571, 96
        %v1586 = vpop.permute.xlu0 %1585
        %1587 = vrot.lane.b32.xlu0 %v1572, 96
        %v1588 = vpop.permute.xlu0 %1587
        %1589 = vrot.lane.b32.xlu0 %v1573, 96
        %v1590 = vpop.permute.xlu0 %1589
        %1591 = vrot.lane.b32.xlu0 %v1574, 96
        %v1592 = vpop.permute.xlu0 %1591
        %v1593 = vsel %vm554, %v1582, %v1584
        %v1594 = vsel %vm554, %v1584, %v1586
        %v1595 = vsel %vm554, %v1588, %v1590
        %v1596 = vsel %vm554, %v1590, %v1592
        %v1601 = vsel %vm246, %v1593, 0.0
        %v1602 = vsel %vm247, %v1594, 0.0
        %v1603 = vsel %vm246, %v1595, 0.0
        %v1604 = vsel %vm247, %v1596, 0.0
        %1605 = vst [vmem:[#allocation3 + $0xc0] sm:$0xff] %v1601
        %1606 = vst [vmem:[#allocation3 + $0xc8] sm:$0xff] %v1602
        %1607 = vst [vmem:[#allocation3 + $0xd0] sm:$0xff] %v1603
        %1608 = vst [vmem:[#allocation3 + $0xd8] sm:$0xff] %v1604
        %v1609 = vld [vmem:[#allocation2] sm:$0xff]
        %v1610 = vld [vmem:[#allocation2 + $0x8] sm:$0xff]
        %v1611 = vld [vmem:[#allocation2 + $0x10] sm:$0xff]
        %v1612 = vld [vmem:[#allocation2 + $0x18] sm:$0xff]
        %v1613 = vld [vmem:[#allocation2 + $0x20] sm:$0xff]
        %v1614 = vld [vmem:[#allocation2 + $0x28] sm:$0xff]
        %1621 = vrot.lane.b32.xlu0 %v1609, 95
        %v1622 = vpop.permute.xlu0 %1621
        %1623 = vrot.lane.b32.xlu0 %v1610, 95
        %v1624 = vpop.permute.xlu0 %1623
        %1625 = vrot.lane.b32.xlu0 %v1611, 95
        %v1626 = vpop.permute.xlu0 %1625
        %1627 = vrot.lane.b32.xlu0 %v1612, 95
        %v1628 = vpop.permute.xlu0 %1627
        %1629 = vrot.lane.b32.xlu0 %v1613, 95
        %v1630 = vpop.permute.xlu0 %1629
        %1631 = vrot.lane.b32.xlu0 %v1614, 95
        %v1632 = vpop.permute.xlu0 %1631
        %v1633 = vsel %vm595, %v1622, %v1624
        %v1634 = vsel %vm595, %v1624, %v1626
        %v1635 = vsel %vm595, %v1628, %v1630
        %v1636 = vsel %vm595, %v1630, %v1632
        %1641 = vst [vmem:[#allocation3 + $0xe0] sm:$0xff] %v1633
        %1642 = vst [vmem:[#allocation3 + $0xe8] sm:$0xff] %v1634
        %1643 = vst [vmem:[#allocation3 + $0xf0] sm:$0xff] %v1635
        %1644 = vst [vmem:[#allocation3 + $0xf8] sm:$0xff] %v1636
        %v1645 = vld [vmem:[#allocation2] sm:$0xff]
        %v1646 = vld [vmem:[#allocation2 + $0x8] sm:$0xff]
        %v1647 = vld [vmem:[#allocation2 + $0x10] sm:$0xff]
        %v1648 = vld [vmem:[#allocation2 + $0x18] sm:$0xff]
        %v1649 = vld [vmem:[#allocation2 + $0x20] sm:$0xff]
        %v1650 = vld [vmem:[#allocation2 + $0x28] sm:$0xff]
        %1657 = vrot.lane.b32.xlu0 %v1645, 94
        %v1658 = vpop.permute.xlu0 %1657
        %1659 = vrot.lane.b32.xlu0 %v1646, 94
        %v1660 = vpop.permute.xlu0 %1659
        %1661 = vrot.lane.b32.xlu0 %v1647, 94
        %v1662 = vpop.permute.xlu0 %1661
        %1663 = vrot.lane.b32.xlu0 %v1648, 94
        %v1664 = vpop.permute.xlu0 %1663
        %1665 = vrot.lane.b32.xlu0 %v1649, 94
        %v1666 = vpop.permute.xlu0 %1665
        %1667 = vrot.lane.b32.xlu0 %v1650, 94
        %v1668 = vpop.permute.xlu0 %1667
        %v1669 = vsel %vm632, %v1658, %v1660
        %v1670 = vsel %vm632, %v1660, %v1662
        %v1671 = vsel %vm632, %v1664, %v1666
        %v1672 = vsel %vm632, %v1666, %v1668
        %v1677 = vsel %vm252, %v1669, 0.0
        %v1678 = vsel %vm253, %v1670, 0.0
        %v1679 = vsel %vm252, %v1671, 0.0
        %v1680 = vsel %vm253, %v1672, 0.0
        %1681 = vst [vmem:[#allocation3 + $0x100] sm:$0xff] %v1677
        %1682 = vst [vmem:[#allocation3 + $0x108] sm:$0xff] %v1678
        %1683 = vst [vmem:[#allocation3 + $0x110] sm:$0xff] %v1679
        %1684 = vst [vmem:[#allocation3 + $0x118] sm:$0xff] %v1680
        %s1685 = scalar_lea.vmem %s3, 16
        %v1686 = vld [vmem:[%s1685] sm:$0xff]
        %v1687 = vld [vmem:[#allocation3] sm:$0xff]
        %v1688 = vld [vmem:[#allocation3 + $0x8] sm:$0xff]
        %v1689 = vld [vmem:[#allocation3 + $0x10] sm:$0xff]
        %v1690 = vld [vmem:[#allocation3 + $0x18] sm:$0xff]
        %v1691 = vld [vmem:[#allocation3 + $0x20] sm:$0xff]
        %v1692 = vld [vmem:[#allocation3 + $0x28] sm:$0xff]
        %v1693 = vld [vmem:[#allocation3 + $0x30] sm:$0xff]
        %v1694 = vld [vmem:[#allocation3 + $0x38] sm:$0xff]
        %v1695 = vld [vmem:[#allocation3 + $0x40] sm:$0xff]
        %v1696 = vld [vmem:[#allocation3 + $0x48] sm:$0xff]
        %v1697 = vld [vmem:[#allocation3 + $0x50] sm:$0xff]
        %v1698 = vld [vmem:[#allocation3 + $0x58] sm:$0xff]
        %v1699 = vld [vmem:[#allocation3 + $0x60] sm:$0xff]
        %v1700 = vld [vmem:[#allocation3 + $0x68] sm:$0xff]
        %v1701 = vld [vmem:[#allocation3 + $0x70] sm:$0xff]
        %v1702 = vld [vmem:[#allocation3 + $0x78] sm:$0xff]
        %v1703 = vld [vmem:[#allocation3 + $0x80] sm:$0xff]
        %v1704 = vld [vmem:[#allocation3 + $0x88] sm:$0xff]
        %v1705 = vld [vmem:[#allocation3 + $0x90] sm:$0xff]
        %v1706 = vld [vmem:[#allocation3 + $0x98] sm:$0xff]
        %v1707 = vld [vmem:[#allocation3 + $0xa0] sm:$0xff]
        %v1708 = vld [vmem:[#allocation3 + $0xa8] sm:$0xff]
        %v1709 = vld [vmem:[#allocation3 + $0xb0] sm:$0xff]
        %v1710 = vld [vmem:[#allocation3 + $0xb8] sm:$0xff]
        %v1711 = vld [vmem:[#allocation3 + $0xc0] sm:$0xff]
        %v1712 = vld [vmem:[#allocation3 + $0xc8] sm:$0xff]
        %v1713 = vld [vmem:[#allocation3 + $0xd0] sm:$0xff]
        %v1714 = vld [vmem:[#allocation3 + $0xd8] sm:$0xff]
        %v1715 = vld [vmem:[#allocation3 + $0xe0] sm:$0xff]
        %v1716 = vld [vmem:[#allocation3 + $0xe8] sm:$0xff]
        %v1717 = vld [vmem:[#allocation3 + $0xf0] sm:$0xff]
        %v1718 = vld [vmem:[#allocation3 + $0xf8] sm:$0xff]
        %v1719 = vld [vmem:[#allocation3 + $0x100] sm:$0xff]
        %v1720 = vld [vmem:[#allocation3 + $0x108] sm:$0xff]
        %v1721 = vld [vmem:[#allocation3 + $0x110] sm:$0xff]
        %v1722 = vld [vmem:[#allocation3 + $0x118] sm:$0xff]
        %1724 = vst [vmem:[#allocation1] ss:$2 sm:$0xff] %v1686
        %v1725 = vld.sshfl [vmem:[#allocation1] sm:$0xff pattern:$0x75316420]
        %v1726 = vld.sshfl [vmem:[#allocation1 + $0x8] sm:$0xff pattern:$0x75316420]
        %v1728 = vsel %vm691, %v1726, 0
        %1730 = vmatpush.msra.mxu0 %v1717
        %1731 = vmatpush.msra.mxu0 %v1715
        %1732 = vmatpush.msra.mxu0 %v1713
        %1733 = vmatpush.msra.mxu0 %v1711
        %1734 = vmatpush.msra.mxu0 %v1709
        %1735 = vmatpush.msra.mxu0 %v1707
        %1736 = vmatpush.msra.mxu0 %v1705
        %1737 = vmatpush.msra.mxu0 %v1703
        %1738 = vmatpush.msra.mxu0 %v1701
        %1739 = vmatpush.msra.mxu0 %v1699
        %1740 = vmatpush.msra.mxu0 %v1697
        %1741 = vmatpush.msra.mxu0 %v1695
        %1742 = vmatpush.msra.mxu0 %v1693
        %1743 = vmatpush.msra.mxu0 %v1691
        %1744 = vmatpush.msra.mxu0 %v1689
        %1745 = vmatpush.msra.mxu0 %v1687
        %1746 = vmatmul.f32.gmra.mxu0 %v1725
        %v1747 = vpop.f32.mrf.mxu0
        %v1748 = vadd.f32 0.0, %v1747
        %1749 = vdwg.mxu0
        %1750 = vmatpush.msra.mxu0 0.0
        %1751 = vmatpush.msra.mxu0 0.0
        %1752 = vmatpush.msra.mxu0 0.0
        %1753 = vmatpush.msra.mxu0 0.0
        %1754 = vmatpush.msra.mxu0 0.0
        %1755 = vmatpush.msra.mxu0 0.0
        %1756 = vmatpush.msra.mxu0 0.0
        %1757 = vmatpush.msra.mxu0 0.0
        %1758 = vmatpush.msra.mxu0 0.0
        %1759 = vmatpush.msra.mxu0 0.0
        %1760 = vmatpush.msra.mxu0 0.0
        %1761 = vmatpush.msra.mxu0 0.0
        %1762 = vmatpush.msra.mxu0 0.0
        %1763 = vmatpush.msra.mxu0 0.0
        %1764 = vmatpush.msra.mxu0 %v1721
        %1765 = vmatpush.msra.mxu0 %v1719
        %1766 = vmatmul.f32.gmra.mxu0 %v1728
        %v1767 = vpop.f32.mrf.mxu0
        %v1768 = vadd.f32 %v1748, %v1767
        %1769 = vdwg.mxu0
        %1770 = vmatpush.msra.mxu0 %v1718
        %1771 = vmatpush.msra.mxu0 %v1716
        %1772 = vmatpush.msra.mxu0 %v1714
        %1773 = vmatpush.msra.mxu0 %v1712
        %1774 = vmatpush.msra.mxu0 %v1710
        %1775 = vmatpush.msra.mxu0 %v1708
        %1776 = vmatpush.msra.mxu0 %v1706
        %1777 = vmatpush.msra.mxu0 %v1704
        %1778 = vmatpush.msra.mxu0 %v1702
        %1779 = vmatpush.msra.mxu0 %v1700
        %1780 = vmatpush.msra.mxu0 %v1698
        %1781 = vmatpush.msra.mxu0 %v1696
        %1782 = vmatpush.msra.mxu0 %v1694
        %1783 = vmatpush.msra.mxu0 %v1692
        %1784 = vmatpush.msra.mxu0 %v1690
        %1785 = vmatpush.msra.mxu0 %v1688
        %1786 = vmatmul.f32.gmra.mxu0 %v1725
        %v1787 = vpop.f32.mrf.mxu0
        %v1788 = vadd.f32 0.0, %v1787
        %1789 = vdwg.mxu0
        %1790 = vmatpush.msra.mxu0 0.0
        %1791 = vmatpush.msra.mxu0 0.0
        %1792 = vmatpush.msra.mxu0 0.0
        %1793 = vmatpush.msra.mxu0 0.0
        %1794 = vmatpush.msra.mxu0 0.0
        %1795 = vmatpush.msra.mxu0 0.0
        %1796 = vmatpush.msra.mxu0 0.0
        %1797 = vmatpush.msra.mxu0 0.0
        %1798 = vmatpush.msra.mxu0 0.0
        %1799 = vmatpush.msra.mxu0 0.0
        %1800 = vmatpush.msra.mxu0 0.0
        %1801 = vmatpush.msra.mxu0 0.0
        %1802 = vmatpush.msra.mxu0 0.0
        %1803 = vmatpush.msra.mxu0 0.0
        %1804 = vmatpush.msra.mxu0 %v1722
        %1805 = vmatpush.msra.mxu0 %v1720
        %1806 = vmatmul.f32.gmra.mxu0 %v1728
        %v1807 = vpop.f32.mrf.mxu0
        %v1808 = vadd.f32 %v1788, %v1807
        %1809 = vdwg.mxu0
        %v1812 = vrot.slane %v1768, 4
        %v1813 = vrot.slane %v1808, 4
        %1816 = vst [vmem:[%s190 + $0x10] sm:$0xf0] %v1812
        %1817 = vst [vmem:[%s190 + $0x18] sm:$0xf0] %v1813
        %s1818 = sand.u32 %s115, 1
        %s1819 = scalar_lea.sflag [#allocation5], %s1818
        %s1820 = sand.u32 %s115, 1
        %s1821 = smul.addr %s1820, 32
        %s1822 = scalar_lea.vmem [#allocation4], %s1821
        // Predicated region
        $region37: #{tpu_custom_call.1} parent=35 // pred_check
          %p1823 = pneg %p125
        $region38: #{tpu_custom_call.1} parent=35 // pred_check_branch
          %1825 = sbr.rel (%p1823) target = $region40
        $region39: #{tpu_custom_call.1} parent=35 // pred_region
          %1827 = vsyncadd %s1819, 0
          %s1828 = smul.addr %s18, 4
          %s1829 = smul.addr %s1828, 8
          %s1830 = scalar_lea.hbm %s4, %s1829
          %s1831 = sshll.u32 %s1822, 4
          %s1832 = int_to_ptr.vmem [resolvable:$true] %s1831
          %s1833 = sshll.u32 %s1830, 4
          %s1834 = int_to_ptr.hbm [resolvable:$true] %s1833
          %1839 = dma.vmem_to_hbm [thread:$0]  %s1832, 512, %s1834, %s1819, 256, 256, 16
        $region40: #{tpu_custom_call.1} parent=35 // pred_fallthru
          _
      $region36: #{tpu_custom_call.1} parent=5 // pred_fallthru
        _
      %p1840 = scmp.le.s32.totalorder 2, %s13
      // Predicated region
      $region41: #{tpu_custom_call.1} parent=5 // pred_check
        %p1841 = pneg %p1840
      $region42: #{tpu_custom_call.1} parent=5 // pred_check_branch
        %1843 = sbr.rel (%p1841) target = $region44
      $region43: #{tpu_custom_call.1} parent=5 // pred_region
        %s1844 = ssub.s32 %s13, 2
        // Predicated region
        $region45: #{tpu_custom_call.1} parent=43 // pred_check
          %p1845 = pneg %p131
        $region46: #{tpu_custom_call.1} parent=43 // pred_check_branch
          %1847 = sbr.rel (%p1845) target = $region48
        $region47: #{tpu_custom_call.1} parent=43 // pred_region
          %s1848 = sand.u32 %s116, 1
          %s1849 = scalar_lea.sflag [#allocation5], %s1848
          %s1850 = sand.u32 %s116, 1
          %s1851 = smul.addr %s1850, 32
          %s1852 = scalar_lea.vmem [#allocation4], %s1851
          %1854 = dma.done %s1849, 512
        $region48: #{tpu_custom_call.1} parent=43 // pred_fallthru
          _
      $region44: #{tpu_custom_call.1} parent=5 // pred_fallthru
        _
    $region6: #{tpu_custom_call.1} parent=1 // loop_footer
      %s17 = sadd.s32 1, %s13
    $region7: #{tpu_custom_call.1} parent=1 // loop_footer_branch
      %12 = sbr.rel target = $region3
    $region8: #{tpu_custom_call.1} parent=1 // loop_exit
      _
    %1855 = vsyncpa [#allocation5], 1
    %s1856 = scalar_lea.sflag [#allocation5], 1
    %1857 = vsyncpa %s1856, 1

</llo_original>
